<compile_context>
chip_gen: v7x
topology: tpu7x:2x2x1
jax: 0.10.0
libtpu: 0.0.40
codegen_flags: <defaults>
</compile_context>

<pallas_src>
import jax
import jax.numpy as jnp
from jax.experimental import pallas as pl
from jax.experimental.pallas import tpu as pltpu

LANE = 128        # lane width / MXU dimension
SUBLANE = 8       # f32 sublane granularity
MAX_TB = 1024     # max batch rows per grid step
MEGACORE_MIN_BATCH = 512   # split batch into 2 "parallel" tiles at/above this
MATMUL_PRECISION = jax.lax.Precision.HIGHEST   # true-f32 accumulation on the MXU


def _round_up(n, m):
    return ((n + m - 1) // m) * m


def qnet_kernel(x_ref, w1_ref, b1_ref, w2_ref, b2_ref, w3_ref, b3_ref, out_ref):
    # One batch tile per grid step; all weights/biases are full VMEM-resident blocks.
    x = x_ref[...]                                              # (TB, state_size)
    h1 = jnp.dot(x, w1_ref[...],
                 preferred_element_type=jnp.float32,
                 precision=MATMUL_PRECISION) + b1_ref[...]      # (TB, 128)
    h1 = jnp.maximum(h1, 0.0)                                   # ReLU
    h2 = jnp.dot(h1, w2_ref[...],
                 preferred_element_type=jnp.float32,
                 precision=MATMUL_PRECISION) + b2_ref[...]      # (TB, 128)
    h2 = jnp.maximum(h2, 0.0)                                   # ReLU
    out = jnp.dot(h2, w3_ref[...],
                  preferred_element_type=jnp.float32,
                  precision=MATMUL_PRECISION) + b3_ref[...]     # (TB, 128) lane-dense
    out_ref[...] = out.astype(out_ref.dtype)


def init_qnet_params(key, state_size, num_actions, h1_size=20, h2_size=15):
    """Init mimicking torch.nn.Linear default U(-1/sqrt(fan_in), +1/sqrt(fan_in))."""
    # TODO(synk): torch.manual_seed(888) init is not reproducible in JAX; parameters
    # are re-created with jax.random (forward-pass math itself is fully translated).
    ks = jax.random.split(key, 6)

    def linear(kw, kb, fan_in, fan_out):
        bound = 1.0 / jnp.sqrt(jnp.float32(fan_in))
        w = jax.random.uniform(kw, (fan_in, fan_out), jnp.float32, -bound, bound)
        b = jax.random.uniform(kb, (1, fan_out), jnp.float32, -bound, bound)
        return w, b

    w1, b1 = linear(ks[0], ks[1], state_size, h1_size)
    w2, b2 = linear(ks[2], ks[3], h1_size, h2_size)
    w3, b3 = linear(ks[4], ks[5], h2_size, num_actions)
    return {"w1": w1, "b1": b1, "w2": w2, "b2": b2, "w3": w3, "b3": b3}


def pad_qnet_params(params):
    """Zero-pad hidden/output feature dims up to 128 (done once, outside the hot path).

    w1 keeps its real row count (it contracts directly against un-padded x);
    every other feature dim is padded to a multiple of 128 so all intermediate
    activations and the output are lane-dense.
    """
    def pad_to(a, rows, cols):
        r, c = a.shape
        return jnp.pad(a, ((0, rows - r), (0, cols - c)))

    s, h1 = params["w1"].shape
    _, h2 = params["w2"].shape
    _, na = params["w3"].shape
    h1p = _round_up(h1, LANE)
    h2p = _round_up(h2, LANE)
    nap = _round_up(na, LANE)
    return {
        "w1": pad_to(params["w1"], s, h1p),   "b1": pad_to(params["b1"], 1, h1p),
        "w2": pad_to(params["w2"], h1p, h2p), "b2": pad_to(params["b2"], 1, h2p),
        "w3": pad_to(params["w3"], h2p, nap), "b3": pad_to(params["b3"], 1, nap),
    }


@jax.jit
def qnet_forward_padded(x, padded_params):
    """x: (batch, state_size) f32 -> lane-dense (batch, 128) output (cols >= num_actions are zero-ish padding)."""
    w1, b1 = padded_params["w1"], padded_params["b1"]
    w2, b2 = padded_params["w2"], padded_params["b2"]
    w3, b3 = padded_params["w3"], padded_params["b3"]

    batch, state_size = x.shape
    a_pad = w3.shape[1]    # 128-multiple (lane-dense output width)

    # Batch tiling: one big sublane-aligned tile for typical batches; split into
    # two "parallel" tiles once the batch is large enough to feed v7x's 2nd TC.
    if batch >= MEGACORE_MIN_BATCH:
        tb = min(_round_up(-(-batch // 2), SUBLANE), MAX_TB)
    else:
        tb = min(_round_up(batch, SUBLANE), MAX_TB)
    grid = (pl.cdiv(batch, tb),)   # ragged last block is masked by Pallas

    # Weights/biases: full blocks, constant index_map -> DMA'd once, VMEM-resident.
    def full(a):
        return pl.BlockSpec(a.shape, lambda i: (0, 0))

    return pl.pallas_call(
        qnet_kernel,
        out_shape=jax.ShapeDtypeStruct((batch, a_pad), jnp.float32),
        grid=grid,
        in_specs=[
            # x: tiled over batch; last dim is the full (un-padded) state_size,
            # which is exempt from the 128-lane block rule.
            pl.BlockSpec((tb, state_size), lambda i: (i, 0)),
            full(w1), full(b1),
            full(w2), full(b2),
            full(w3), full(b3),
        ],
        out_specs=pl.BlockSpec((tb, a_pad), lambda i: (i, 0)),  # lane-dense
        compiler_params=pltpu.CompilerParams(
            dimension_semantics=("parallel",),   # batch tiles shard across v7x's 2 TCs
        ),
    )(x, w1, b1, w2, b2, w3, b3)


def qnet_forward(x, padded_params, num_actions):
    """Convenience wrapper: slice the logical action columns at the consumer.

    If the consumer is itself under jit, XLA fuses this slice with downstream ops.
    """
    return qnet_forward_padded(x, padded_params)[:, :num_actions]


def ref_forward(x, params):
    """Pure-JAX reference of the same forward pass (unpadded params)."""
    h1 = jnp.maximum(
        jnp.dot(x, params["w1"], precision=MATMUL_PRECISION) + params["b1"], 0.0)
    h2 = jnp.maximum(
        jnp.dot(h1, params["w2"], precision=MATMUL_PRECISION) + params["b2"], 0.0)
    return jnp.dot(h2, params["w3"], precision=MATMUL_PRECISION) + params["b3"]


if __name__ == "__main__":
    key = jax.random.PRNGKey(0)
    k_x, k_x2, k_x3, k_p = jax.random.split(key, 4)

    state_size, num_actions = 16, 4
    params = init_qnet_params(k_p, state_size, num_actions, h1_size=20, h2_size=15)
    padded = pad_qnet_params(params)

    # 1) Small per-step-inference batch (ragged 8-row tile, masked rows).
    batch = 2
    x = jax.random.normal(k_x, (batch, state_size), jnp.float32)
    out = qnet_forward(x, padded, num_actions)
    jax.block_until_ready(out)
    expected = ref_forward(x, params)
    assert out.shape == (batch, num_actions)
    assert jnp.allclose(out, expected, atol=1e-5, rtol=1e-5)

    # 2) Replay-buffer-sized batch: now a SINGLE 304-row grid step.
    batch2 = 300
    x2 = jax.random.normal(k_x2, (batch2, state_size), jnp.float32)
    out2 = qnet_forward(x2, padded, num_actions)
    jax.block_until_ready(out2)
    expected2 = ref_forward(x2, params)
    assert out2.shape == (batch2, num_actions)
    assert jnp.allclose(out2, expected2, atol=1e-5, rtol=1e-5)

    # 3) Large batch: exercises the two-tile "parallel" (megacore) path with a
    #    ragged, masked final block.
    batch3 = 600
    x3 = jax.random.normal(k_x3, (batch3, state_size), jnp.float32)
    out3 = qnet_forward(x3, padded, num_actions)
    jax.block_until_ready(out3)
    expected3 = ref_forward(x3, params)
    assert out3.shape == (batch3, num_actions)
    assert jnp.allclose(out3, expected3, atol=1e-5, rtol=1e-5)

    print("KERNEL_OK")
</pallas_src>

<mosaic_0001>
module attributes {stable_mosaic.version = 11 : i64} {
  func.func @qnet_kernel(%arg0: i32, %arg1: memref<8x16xf32, #tpu.memory_space<vmem>>, %arg2: memref<16x128xf32, #tpu.memory_space<vmem>>, %arg3: memref<1x128xf32, #tpu.memory_space<vmem>>, %arg4: memref<128x128xf32, #tpu.memory_space<vmem>>, %arg5: memref<1x128xf32, #tpu.memory_space<vmem>>, %arg6: memref<128x128xf32, #tpu.memory_space<vmem>>, %arg7: memref<1x128xf32, #tpu.memory_space<vmem>>, %arg8: memref<8x128xf32, #tpu.memory_space<vmem>>) attributes {dimension_semantics = [#tpu.dimension_semantics<parallel>], iteration_bounds = array<i64: 1>, scalar_prefetch = 0 : i64, scratch_operands = 0 : i64, tpu.core_type = #tpu.core_type<tc>, window_params = [{transform_indices = @transform_0, window_bounds = array<i64: 8, 16>}, {pipeline_mode = #tpu.pipeline_mode<synchronous>, transform_indices = @transform_1, window_bounds = array<i64: 16, 128>}, {pipeline_mode = #tpu.pipeline_mode<synchronous>, transform_indices = @transform_2, window_bounds = array<i64: 1, 128>}, {pipeline_mode = #tpu.pipeline_mode<synchronous>, transform_indices = @transform_3, window_bounds = array<i64: 128, 128>}, {pipeline_mode = #tpu.pipeline_mode<synchronous>, transform_indices = @transform_4, window_bounds = array<i64: 1, 128>}, {pipeline_mode = #tpu.pipeline_mode<synchronous>, transform_indices = @transform_5, window_bounds = array<i64: 128, 128>}, {pipeline_mode = #tpu.pipeline_mode<synchronous>, transform_indices = @transform_6, window_bounds = array<i64: 1, 128>}, {transform_indices = @transform_7, window_bounds = array<i64: 8, 128>}]} {
    %c0 = arith.constant 0 : index
    %c0_0 = arith.constant 0 : index
    %0 = vector.load %arg1[%c0, %c0_0] : memref<8x16xf32, #tpu.memory_space<vmem>>, vector<8x16xf32>
    %c0_1 = arith.constant 0 : index
    %c0_2 = arith.constant 0 : index
    %1 = vector.load %arg2[%c0_1, %c0_2] : memref<16x128xf32, #tpu.memory_space<vmem>>, vector<16x128xf32>
    %cst = arith.constant dense<0.000000e+00> : vector<8x128xf32>
    %2 = tpu.matmul %0, %1, %cst {dimension_numbers = #tpu.dot_dimension_numbers<[1], [0], [0], [1], [0, 0, 1, 1], [], []>, precision = #tpu.contract_precision<fp32>} : vector<8x16xf32>, vector<16x128xf32>, vector<8x128xf32> -> vector<8x128xf32>
    %c0_3 = arith.constant 0 : index
    %c0_4 = arith.constant 0 : index
    %3 = vector.load %arg3[%c0_3, %c0_4] : memref<1x128xf32, #tpu.memory_space<vmem>>, vector<1x128xf32>
    %4 = vector.broadcast %3 : vector<1x128xf32> to vector<8x128xf32>
    %5 = arith.addf %2, %4 : vector<8x128xf32>
    %cst_5 = arith.constant 0.000000e+00 : f32
    %6 = vector.broadcast %cst_5 : f32 to vector<8x128xf32>
    %7 = arith.maximumf %5, %6 : vector<8x128xf32>
    %c0_6 = arith.constant 0 : index
    %c0_7 = arith.constant 0 : index
    %8 = vector.load %arg4[%c0_6, %c0_7] : memref<128x128xf32, #tpu.memory_space<vmem>>, vector<128x128xf32>
    %cst_8 = arith.constant dense<0.000000e+00> : vector<8x128xf32>
    %9 = tpu.matmul %7, %8, %cst_8 {dimension_numbers = #tpu.dot_dimension_numbers<[1], [0], [0], [1], [0, 0, 1, 1], [], []>, precision = #tpu.contract_precision<fp32>} : vector<8x128xf32>, vector<128x128xf32>, vector<8x128xf32> -> vector<8x128xf32>
    %c0_9 = arith.constant 0 : index
    %c0_10 = arith.constant 0 : index
    %10 = vector.load %arg5[%c0_9, %c0_10] : memref<1x128xf32, #tpu.memory_space<vmem>>, vector<1x128xf32>
    %11 = vector.broadcast %10 : vector<1x128xf32> to vector<8x128xf32>
    %12 = arith.addf %9, %11 : vector<8x128xf32>
    %cst_11 = arith.constant 0.000000e+00 : f32
    %13 = vector.broadcast %cst_11 : f32 to vector<8x128xf32>
    %14 = arith.maximumf %12, %13 : vector<8x128xf32>
    %c0_12 = arith.constant 0 : index
    %c0_13 = arith.constant 0 : index
    %15 = vector.load %arg6[%c0_12, %c0_13] : memref<128x128xf32, #tpu.memory_space<vmem>>, vector<128x128xf32>
    %cst_14 = arith.constant dense<0.000000e+00> : vector<8x128xf32>
    %16 = tpu.matmul %14, %15, %cst_14 {dimension_numbers = #tpu.dot_dimension_numbers<[1], [0], [0], [1], [0, 0, 1, 1], [], []>, precision = #tpu.contract_precision<fp32>} : vector<8x128xf32>, vector<128x128xf32>, vector<8x128xf32> -> vector<8x128xf32>
    %c0_15 = arith.constant 0 : index
    %c0_16 = arith.constant 0 : index
    %17 = vector.load %arg7[%c0_15, %c0_16] : memref<1x128xf32, #tpu.memory_space<vmem>>, vector<1x128xf32>
    %18 = vector.broadcast %17 : vector<1x128xf32> to vector<8x128xf32>
    %19 = arith.addf %16, %18 : vector<8x128xf32>
    %c0_17 = arith.constant 0 : index
    %c0_18 = arith.constant 0 : index
    %20 = vector.load %arg8[%c0_17, %c0_18] : memref<8x128xf32, #tpu.memory_space<vmem>>, vector<8x128xf32>
    tpu.vector_store %arg8[%c0_17, %c0_18], %19 {strides = array<i32>} : memref<8x128xf32, #tpu.memory_space<vmem>>, vector<8x128xf32>,
    return
  }
  func.func @transform_0(%arg0: i32) -> (i32, i32) {
    %c0_i32 = arith.constant 0 : i32
    %c0_i32_0 = arith.constant 0 : i32
    return %arg0, %c0_i32 : i32, i32
  }
  func.func @transform_1(%arg0: i32) -> (i32, i32) {
    %c0_i32 = arith.constant 0 : i32
    %c0_i32_0 = arith.constant 0 : i32
    %c0_i32_1 = arith.constant 0 : i32
    return %c0_i32, %c0_i32_0 : i32, i32
  }
  func.func @transform_2(%arg0: i32) -> (i32, i32) {
    %c0_i32 = arith.constant 0 : i32
    %c0_i32_0 = arith.constant 0 : i32
    %c0_i32_1 = arith.constant 0 : i32
    return %c0_i32, %c0_i32_0 : i32, i32
  }
  func.func @transform_3(%arg0: i32) -> (i32, i32) {
    %c0_i32 = arith.constant 0 : i32
    %c0_i32_0 = arith.constant 0 : i32
    %c0_i32_1 = arith.constant 0 : i32
    return %c0_i32, %c0_i32_0 : i32, i32
  }
  func.func @transform_4(%arg0: i32) -> (i32, i32) {
    %c0_i32 = arith.constant 0 : i32
    %c0_i32_0 = arith.constant 0 : i32
    %c0_i32_1 = arith.constant 0 : i32
    return %c0_i32, %c0_i32_0 : i32, i32
  }
  func.func @transform_5(%arg0: i32) -> (i32, i32) {
    %c0_i32 = arith.constant 0 : i32
    %c0_i32_0 = arith.constant 0 : i32
    %c0_i32_1 = arith.constant 0 : i32
    return %c0_i32, %c0_i32_0 : i32, i32
  }
  func.func @transform_6(%arg0: i32) -> (i32, i32) {
    %c0_i32 = arith.constant 0 : i32
    %c0_i32_0 = arith.constant 0 : i32
    %c0_i32_1 = arith.constant 0 : i32
    return %c0_i32, %c0_i32_0 : i32, i32
  }
  func.func @transform_7(%arg0: i32) -> (i32, i32) {
    %c0_i32 = arith.constant 0 : i32
    %c0_i32_0 = arith.constant 0 : i32
    return %arg0, %c0_i32 : i32, i32
  }
}

</mosaic_0001>

<llo_original>
// kernel: qnet_forward_padded.1
$region0: #{qnet_forward_padded.1}
  #allocation0 [shape = 'u32[]', space=smem, size = 0x4, offset = 0x4, fixed_abs, tag = 'smem constant byte address 0x4 - core index']
  #allocation1 [shape = 'u32[144,128]{1,0:T(1,128)}', space=vmem, size = 0x12000, scoped, tag = 'internal scratch']
  %s0 = inlined_call_operand.hbm [shape: f32[2,16], index: 0, kind: input, shape index: {}]
  %s1 = inlined_call_operand.hbm [shape: f32[16,128], index: 1, kind: input, shape index: {}]
  %s2 = inlined_call_operand.vmem [shape: f32[1,128], index: 2, kind: input, shape index: {}]
  %s3 = inlined_call_operand.hbm [shape: f32[128,128], index: 3, kind: input, shape index: {}]
  %s4 = inlined_call_operand.vmem [shape: f32[1,128], index: 4, kind: input, shape index: {}]
  %s5 = inlined_call_operand.hbm [shape: f32[128,128], index: 5, kind: input, shape index: {}]
  %s6 = inlined_call_operand.vmem [shape: f32[1,128], index: 6, kind: input, shape index: {}]
  %s7 = inlined_call_operand.hbm [shape: f32[2,128], index: 7, kind: output, shape index: {}]
  %s8 = sld [smem:[#allocation0]]
  $region54: #{qnet_forward_padded.1} parent=0
    _
  %s10 = ssub.s32 1, %s8
  %s11 = scalar_select 0, %s10, %s8
  $region1: #{qnet_forward_padded.1} parent=0
    #allocation2 [shape = 'u8[4096]{0}', space=vmem, size = 0x1000, scoped, tag = 'input window, operand 0, single buffered']
    #allocation3 [shape = 's32[1]{0}', space=sflag, size = 0x4, scoped, tag = 'scoped memory for qnet_forward_padded.1']
    #allocation4 [shape = 's32[1]{0}', space=sflag, size = 0x4, scoped, tag = 'scoped memory for qnet_forward_padded.1']
    #allocation5 [shape = 'u8[8192]{0}', space=vmem, size = 0x2000, scoped, tag = 'input window, operand 1, single buffered']
    #allocation6 [shape = 's32[1]{0}', space=sflag, size = 0x4, scoped, tag = 'scoped memory for qnet_forward_padded.1']
    #allocation7 [shape = 'u8[65536]{0}', space=vmem, size = 0x10000, scoped, tag = 'input window, operand 3, single buffered']
    #allocation8 [shape = 'u8[65536]{0}', space=vmem, size = 0x10000, scoped, tag = 'input window, operand 5, single buffered']
    #allocation9 [shape = 's32[1]{0}', space=sflag, size = 0x4, scoped, tag = 'scoped memory for qnet_forward_padded.1']
    #allocation10 [shape = 'u8[4096]{0}', space=vmem, size = 0x1000, scoped, tag = 'output window, operand 0, single buffered']
    %12 = vsyncpa [#allocation3], 0
    %13 = vsyncpa [#allocation6], 0
    %14 = vsyncpa [#allocation9], 0
    %15 = vsyncpa [#allocation4], 0
    // Predicated region
    $region2: #{qnet_forward_padded.1} parent=1 // pred_check
      _
    $region3: #{qnet_forward_padded.1} parent=1 // pred_check_branch
      %17 = sbr.rel (0) target = $region5
    $region4: #{qnet_forward_padded.1} parent=1 // pred_region
      %s19 = ssub.s32 128, 32
      %20 = vsyncadd [#allocation3], %s19
      %s21 = sshll.u32 [#allocation2], 4
      %s22 = int_to_ptr.vmem [resolvable:$true] %s21
      %27 = dma.hbm_to_vmem [thread:$0]  %s0, 32, %s22, [#allocation3], 32, 32, 2
    $region5: #{qnet_forward_padded.1} parent=1 // pred_fallthru
      _
    // Predicated region
    $region6: #{qnet_forward_padded.1} parent=1 // pred_check
      _
    $region7: #{qnet_forward_padded.1} parent=1 // pred_check_branch
      %29 = sbr.rel (0) target = $region9
    $region8: #{qnet_forward_padded.1} parent=1 // pred_region
      %s31 = ssub.s32 256, 256
      %32 = vsyncadd [#allocation6], %s31
      %s33 = sshll.u32 [#allocation5], 4
      %s34 = int_to_ptr.vmem [resolvable:$true] %s33
      %39 = dma.hbm_to_vmem [thread:$0]  %s1, 256, %s34, [#allocation6], 128, 128, 8
    $region9: #{qnet_forward_padded.1} parent=1 // pred_fallthru
      _
    // Predicated region
    $region10: #{qnet_forward_padded.1} parent=1 // pred_check
      _
    $region11: #{qnet_forward_padded.1} parent=1 // pred_check_branch
      %41 = sbr.rel (0) target = $region13
    $region12: #{qnet_forward_padded.1} parent=1 // pred_region
      _
    $region13: #{qnet_forward_padded.1} parent=1 // pred_fallthru
      _
    // Predicated region
    $region14: #{qnet_forward_padded.1} parent=1 // pred_check
      _
    $region15: #{qnet_forward_padded.1} parent=1 // pred_check_branch
      %43 = sbr.rel (0) target = $region17
    $region16: #{qnet_forward_padded.1} parent=1 // pred_region
      %s45 = ssub.s32 2048, 2048
      %46 = vsyncadd [#allocation6], %s45
      %s47 = sshll.u32 [#allocation7], 4
      %s48 = int_to_ptr.vmem [resolvable:$true] %s47
      %53 = dma.hbm_to_vmem [thread:$0]  %s3, 2048, %s48, [#allocation6], 128, 128, 8
    $region17: #{qnet_forward_padded.1} parent=1 // pred_fallthru
      _
    // Predicated region
    $region18: #{qnet_forward_padded.1} parent=1 // pred_check
      _
    $region19: #{qnet_forward_padded.1} parent=1 // pred_check_branch
      %55 = sbr.rel (0) target = $region21
    $region20: #{qnet_forward_padded.1} parent=1 // pred_region
      _
    $region21: #{qnet_forward_padded.1} parent=1 // pred_fallthru
      _
    // Predicated region
    $region22: #{qnet_forward_padded.1} parent=1 // pred_check
      _
    $region23: #{qnet_forward_padded.1} parent=1 // pred_check_branch
      %57 = sbr.rel (0) target = $region25
    $region24: #{qnet_forward_padded.1} parent=1 // pred_region
      %s59 = ssub.s32 2048, 2048
      %60 = vsyncadd [#allocation9], %s59
      %s61 = sshll.u32 [#allocation8], 4
      %s62 = int_to_ptr.vmem [resolvable:$true] %s61
      %67 = dma.hbm_to_vmem [thread:$0]  %s5, 2048, %s62, [#allocation9], 128, 128, 8
    $region25: #{qnet_forward_padded.1} parent=1 // pred_fallthru
      _
    // Predicated region
    $region26: #{qnet_forward_padded.1} parent=1 // pred_check
      _
    $region27: #{qnet_forward_padded.1} parent=1 // pred_check_branch
      %69 = sbr.rel (0) target = $region29
    $region28: #{qnet_forward_padded.1} parent=1 // pred_region
      _
    $region29: #{qnet_forward_padded.1} parent=1 // pred_fallthru
      _
    // Predicated region
    $region30: #{qnet_forward_padded.1} parent=1 // pred_check
      _
    $region31: #{qnet_forward_padded.1} parent=1 // pred_check_branch
      %71 = sbr.rel (0) target = $region33
    $region32: #{qnet_forward_padded.1} parent=1 // pred_region
      %72 = dma.done [#allocation3], 128
    $region33: #{qnet_forward_padded.1} parent=1 // pred_fallthru
      _
    // Predicated region
    $region34: #{qnet_forward_padded.1} parent=1 // pred_check
      _
    $region35: #{qnet_forward_padded.1} parent=1 // pred_check_branch
      %74 = sbr.rel (0) target = $region37
    $region36: #{qnet_forward_padded.1} parent=1 // pred_region
      %75 = dma.done [#allocation6], 256
    $region37: #{qnet_forward_padded.1} parent=1 // pred_fallthru
      _
    // Predicated region
    $region38: #{qnet_forward_padded.1} parent=1 // pred_check
      _
    $region39: #{qnet_forward_padded.1} parent=1 // pred_check_branch
      %77 = sbr.rel (0) target = $region41
    $region40: #{qnet_forward_padded.1} parent=1 // pred_region
      %78 = dma.done [#allocation6], 2048
    $region41: #{qnet_forward_padded.1} parent=1 // pred_fallthru
      _
    // Predicated region
    $region42: #{qnet_forward_padded.1} parent=1 // pred_check
      _
    $region43: #{qnet_forward_padded.1} parent=1 // pred_check_branch
      %80 = sbr.rel (0) target = $region45
    $region44: #{qnet_forward_padded.1} parent=1 // pred_region
      %81 = dma.done [#allocation9], 2048
    $region45: #{qnet_forward_padded.1} parent=1 // pred_fallthru
      _
    %v82 = vld [vmem:[#allocation2] sm:$0xff]
    %v83 = vld [vmem:[#allocation5] sm:$0xff]
    %v84 = vld [vmem:[#allocation5 + $0x8] sm:$0xff]
    %v85 = vld [vmem:[%s2] sm:$0x1]
    %v87 = vlaneseq
    %v88 = vshrl.u32 %v87, 7
    %v89 = vsub.s32 0, %v88
    %v90 = vrot.slane %v85, %v89
    %vm92 = vcmask 130048
    %v94 = vsel %vm92, %v82, 0
    %96 = vmatprep.subr.mxu0 0.0
    %v97 = vand.u32 %v83, 4294901760
    %98 = vmatpush1.msra.mxu0 %v97
    %99 = vmatprep.subr.mxu0 0.0
    %v100 = vand.u32 %v84, 4294901760
    %101 = vmatpush1.msra.mxu0 %v100
    %102 = vmatprep.subr.mxu0 0.0
    %103 = vmatpush1.msra.mxu0 0.0
    %104 = vmatprep.subr.mxu0 0.0
    %105 = vmatpush1.msra.mxu0 0.0
    %106 = vmatprep.subr.mxu0 0.0
    %107 = vmatpush1.msra.mxu0 0.0
    %108 = vmatprep.subr.mxu0 0.0
    %109 = vmatpush1.msra.mxu0 0.0
    %110 = vmatprep.subr.mxu0 0.0
    %111 = vmatpush1.msra.mxu0 0.0
    %112 = vmatprep.subr.mxu0 0.0
    %113 = vmatpush1.msra.mxu0 0.0
    %114 = vmatprep.subr.mxu0 0.0
    %115 = vmatpush1.msra.mxu0 0.0
    %116 = vmatprep.subr.mxu0 0.0
    %117 = vmatpush1.msra.mxu0 0.0
    %118 = vmatprep.subr.mxu0 0.0
    %119 = vmatpush1.msra.mxu0 0.0
    %120 = vmatprep.subr.mxu0 0.0
    %121 = vmatpush1.msra.mxu0 0.0
    %122 = vmatprep.subr.mxu0 0.0
    %123 = vmatpush1.msra.mxu0 0.0
    %124 = vmatprep.subr.mxu0 0.0
    %125 = vmatpush1.msra.mxu0 0.0
    %126 = vmatprep.subr.mxu0 0.0
    %127 = vmatpush1.msra.mxu0 0.0
    %128 = vmatprep.subr.mxu0 0.0
    %129 = vmatpush1.msra.mxu0 0.0
    %130 = vmatprep.subr.mxu0 0.0
    %131 = vmatpush1.msra.mxu0 0.0
    %132 = vmatprep.subr.mxu0 0.0
    %133 = vmatpush1.msra.mxu0 0.0
    %134 = vmatprep.subr.mxu0 0.0
    %135 = vmatpush1.msra.mxu0 0.0
    %136 = vmatprep.subr.mxu0 0.0
    %137 = vmatpush1.msra.mxu0 0.0
    %138 = vmatprep.subr.mxu0 0.0
    %139 = vmatpush1.msra.mxu0 0.0
    %140 = vmatprep.subr.mxu0 0.0
    %141 = vmatpush1.msra.mxu0 0.0
    %142 = vmatprep.subr.mxu0 0.0
    %143 = vmatpush1.msra.mxu0 0.0
    %144 = vmatprep.subr.mxu0 0.0
    %145 = vmatpush1.msra.mxu0 0.0
    %146 = vmatprep.subr.mxu0 0.0
    %147 = vmatpush1.msra.mxu0 0.0
    %148 = vmatprep.subr.mxu0 0.0
    %149 = vmatpush1.msra.mxu0 0.0
    %150 = vmatprep.subr.mxu0 0.0
    %151 = vmatpush1.msra.mxu0 0.0
    %152 = vmatprep.subr.mxu0 0.0
    %153 = vmatpush1.msra.mxu0 0.0
    %154 = vmatprep.subr.mxu0 0.0
    %155 = vmatpush1.msra.mxu0 0.0
    %156 = vmatprep.subr.mxu0 0.0
    %157 = vmatpush1.msra.mxu0 0.0
    %158 = vmatprep.subr.mxu0 0.0
    %159 = vmatpush1.msra.mxu0 0.0
    %160 = vmatprep.subr.mxu0 0.0
    %161 = vmatpush1.msra.mxu0 0.0
    %162 = vmatprep.mubr.f32.mxu0 0.0
    %v163 = vand.u32 %v94, 4294901760
    %v164 = vsub.f32 %v94, %v163
    %v165 = vand.u32 %v164, 4294901760
    %v166 = vsub.f32 %v164, %v165
    %v167 = vand.u32 %v166, 4294901760
    %168 = vmatmul.mubr.f32.gmra.mrb[0].mxu0 %v167
    %v169 = vpop.f32.mrb[0].mxu0
    %v170 = vadd.f32 %v90, %v169
    %v171 = vpop.f32.mrb[0].mxu0
    %172 = vdwg.mxu0
    %173 = vmatprep.subr.mxu0 0.0
    %v174 = vand.u32 %v83, 4294901760
    %v175 = vsub.f32 %v83, %v174
    %v176 = vand.u32 %v175, 4294901760
    %v177 = vsub.f32 %v175, %v176
    %v178 = vand.u32 %v177, 4294901760
    %179 = vmatpush1.msra.mxu0 %v178
    %180 = vmatprep.subr.mxu0 0.0
    %v181 = vand.u32 %v84, 4294901760
    %v182 = vsub.f32 %v84, %v181
    %v183 = vand.u32 %v182, 4294901760
    %v184 = vsub.f32 %v182, %v183
    %v185 = vand.u32 %v184, 4294901760
    %186 = vmatpush1.msra.mxu0 %v185
    %187 = vmatprep.subr.mxu0 0.0
    %188 = vmatpush1.msra.mxu0 0.0
    %189 = vmatprep.subr.mxu0 0.0
    %190 = vmatpush1.msra.mxu0 0.0
    %191 = vmatprep.subr.mxu0 0.0
    %192 = vmatpush1.msra.mxu0 0.0
    %193 = vmatprep.subr.mxu0 0.0
    %194 = vmatpush1.msra.mxu0 0.0
    %195 = vmatprep.subr.mxu0 0.0
    %196 = vmatpush1.msra.mxu0 0.0
    %197 = vmatprep.subr.mxu0 0.0
    %198 = vmatpush1.msra.mxu0 0.0
    %199 = vmatprep.subr.mxu0 0.0
    %200 = vmatpush1.msra.mxu0 0.0
    %201 = vmatprep.subr.mxu0 0.0
    %202 = vmatpush1.msra.mxu0 0.0
    %203 = vmatprep.subr.mxu0 0.0
    %204 = vmatpush1.msra.mxu0 0.0
    %205 = vmatprep.subr.mxu0 0.0
    %206 = vmatpush1.msra.mxu0 0.0
    %207 = vmatprep.subr.mxu0 0.0
    %208 = vmatpush1.msra.mxu0 0.0
    %209 = vmatprep.subr.mxu0 0.0
    %210 = vmatpush1.msra.mxu0 0.0
    %211 = vmatprep.subr.mxu0 0.0
    %212 = vmatpush1.msra.mxu0 0.0
    %213 = vmatprep.subr.mxu0 0.0
    %214 = vmatpush1.msra.mxu0 0.0
    %215 = vmatprep.subr.mxu0 0.0
    %216 = vmatpush1.msra.mxu0 0.0
    %217 = vmatprep.subr.mxu0 0.0
    %218 = vmatpush1.msra.mxu0 0.0
    %219 = vmatprep.subr.mxu0 0.0
    %220 = vmatpush1.msra.mxu0 0.0
    %221 = vmatprep.subr.mxu0 0.0
    %222 = vmatpush1.msra.mxu0 0.0
    %223 = vmatprep.subr.mxu0 0.0
    %224 = vmatpush1.msra.mxu0 0.0
    %225 = vmatprep.subr.mxu0 0.0
    %226 = vmatpush1.msra.mxu0 0.0
    %227 = vmatprep.subr.mxu0 0.0
    %228 = vmatpush1.msra.mxu0 0.0
    %229 = vmatprep.subr.mxu0 0.0
    %230 = vmatpush1.msra.mxu0 0.0
    %231 = vmatprep.subr.mxu0 0.0
    %232 = vmatpush1.msra.mxu0 0.0
    %233 = vmatprep.subr.mxu0 0.0
    %234 = vmatpush1.msra.mxu0 0.0
    %235 = vmatprep.subr.mxu0 0.0
    %236 = vmatpush1.msra.mxu0 0.0
    %237 = vmatprep.subr.mxu0 0.0
    %238 = vmatpush1.msra.mxu0 0.0
    %239 = vmatprep.subr.mxu0 0.0
    %240 = vmatpush1.msra.mxu0 0.0
    %241 = vmatprep.subr.mxu0 0.0
    %242 = vmatpush1.msra.mxu0 0.0
    %243 = vmatprep.subr.mxu0 0.0
    %244 = vmatpush1.msra.mxu0 0.0
    %245 = vmatprep.subr.mxu0 0.0
    %246 = vmatpush1.msra.mxu0 0.0
    %247 = vmatprep.mubr.f32.mxu0 0.0
    %v248 = vand.u32 %v94, 4294901760
    %249 = vmatmul.mubr.f32.gmra.mrb[0].mxu0 %v248
    %v250 = vpop.f32.mrb[0].mxu0
    %v251 = vadd.f32 %v170, %v250
    %v252 = vpop.f32.mrb[0].mxu0
    %253 = vdwg.mxu0
    %254 = vmatprep.subr.mxu0 0.0
    %v255 = vand.u32 %v83, 4294901760
    %v256 = vsub.f32 %v83, %v255
    %257 = vmatpush1.msra.mxu0 %v256
    %258 = vmatprep.subr.mxu0 0.0
    %v259 = vand.u32 %v84, 4294901760
    %v260 = vsub.f32 %v84, %v259
    %261 = vmatpush1.msra.mxu0 %v260
    %262 = vmatprep.subr.mxu0 0.0
    %263 = vmatpush1.msra.mxu0 0.0
    %264 = vmatprep.subr.mxu0 0.0
    %265 = vmatpush1.msra.mxu0 0.0
    %266 = vmatprep.subr.mxu0 0.0
    %267 = vmatpush1.msra.mxu0 0.0
    %268 = vmatprep.subr.mxu0 0.0
    %269 = vmatpush1.msra.mxu0 0.0
    %270 = vmatprep.subr.mxu0 0.0
    %271 = vmatpush1.msra.mxu0 0.0
    %272 = vmatprep.subr.mxu0 0.0
    %273 = vmatpush1.msra.mxu0 0.0
    %274 = vmatprep.subr.mxu0 0.0
    %275 = vmatpush1.msra.mxu0 0.0
    %276 = vmatprep.subr.mxu0 0.0
    %277 = vmatpush1.msra.mxu0 0.0
    %278 = vmatprep.subr.mxu0 0.0
    %279 = vmatpush1.msra.mxu0 0.0
    %280 = vmatprep.subr.mxu0 0.0
    %281 = vmatpush1.msra.mxu0 0.0
    %282 = vmatprep.subr.mxu0 0.0
    %283 = vmatpush1.msra.mxu0 0.0
    %284 = vmatprep.subr.mxu0 0.0
    %285 = vmatpush1.msra.mxu0 0.0
    %286 = vmatprep.subr.mxu0 0.0
    %287 = vmatpush1.msra.mxu0 0.0
    %288 = vmatprep.subr.mxu0 0.0
    %289 = vmatpush1.msra.mxu0 0.0
    %290 = vmatprep.subr.mxu0 0.0
    %291 = vmatpush1.msra.mxu0 0.0
    %292 = vmatprep.subr.mxu0 0.0
    %293 = vmatpush1.msra.mxu0 0.0
    %294 = vmatprep.subr.mxu0 0.0
    %295 = vmatpush1.msra.mxu0 0.0
    %296 = vmatprep.subr.mxu0 0.0
    %297 = vmatpush1.msra.mxu0 0.0
    %298 = vmatprep.subr.mxu0 0.0
    %299 = vmatpush1.msra.mxu0 0.0
    %300 = vmatprep.subr.mxu0 0.0
    %301 = vmatpush1.msra.mxu0 0.0
    %302 = vmatprep.subr.mxu0 0.0
    %303 = vmatpush1.msra.mxu0 0.0
    %304 = vmatprep.subr.mxu0 0.0
    %305 = vmatpush1.msra.mxu0 0.0
    %306 = vmatprep.subr.mxu0 0.0
    %307 = vmatpush1.msra.mxu0 0.0
    %308 = vmatprep.subr.mxu0 0.0
    %309 = vmatpush1.msra.mxu0 0.0
    %310 = vmatprep.subr.mxu0 0.0
    %311 = vmatpush1.msra.mxu0 0.0
    %312 = vmatprep.subr.mxu0 0.0
    %313 = vmatpush1.msra.mxu0 0.0
    %314 = vmatprep.subr.mxu0 0.0
    %315 = vmatpush1.msra.mxu0 0.0
    %316 = vmatprep.subr.mxu0 0.0
    %317 = vmatpush1.msra.mxu0 0.0
    %318 = vmatprep.subr.mxu0 0.0
    %319 = vmatpush1.msra.mxu0 0.0
    %320 = vmatprep.subr.mxu0 0.0
    %321 = vmatpush1.msra.mxu0 0.0
    %322 = vmatprep.mubr.f32.mxu0 0.0
    %v323 = vand.u32 %v94, 4294901760
    %v324 = vsub.f32 %v94, %v323
    %325 = vmatmul.mubr.f32.gmra.mrb[0].mxu0 %v324
    %v326 = vpop.f32.mrb[0].mxu0
    %v327 = vadd.f32 %v251, %v326
    %v328 = vpop.f32.mrb[0].mxu0
    %329 = vdwg.mxu0
    %330 = vmatprep.subr.mxu0 0.0
    %v331 = vand.u32 %v83, 4294901760
    %332 = vmatpush1.msra.mxu0 %v331
    %333 = vmatprep.subr.mxu0 0.0
    %v334 = vand.u32 %v84, 4294901760
    %335 = vmatpush1.msra.mxu0 %v334
    %336 = vmatprep.subr.mxu0 0.0
    %337 = vmatpush1.msra.mxu0 0.0
    %338 = vmatprep.subr.mxu0 0.0
    %339 = vmatpush1.msra.mxu0 0.0
    %340 = vmatprep.subr.mxu0 0.0
    %341 = vmatpush1.msra.mxu0 0.0
    %342 = vmatprep.subr.mxu0 0.0
    %343 = vmatpush1.msra.mxu0 0.0
    %344 = vmatprep.subr.mxu0 0.0
    %345 = vmatpush1.msra.mxu0 0.0
    %346 = vmatprep.subr.mxu0 0.0
    %347 = vmatpush1.msra.mxu0 0.0
    %348 = vmatprep.subr.mxu0 0.0
    %349 = vmatpush1.msra.mxu0 0.0
    %350 = vmatprep.subr.mxu0 0.0
    %351 = vmatpush1.msra.mxu0 0.0
    %352 = vmatprep.subr.mxu0 0.0
    %353 = vmatpush1.msra.mxu0 0.0
    %354 = vmatprep.subr.mxu0 0.0
    %355 = vmatpush1.msra.mxu0 0.0
    %356 = vmatprep.subr.mxu0 0.0
    %357 = vmatpush1.msra.mxu0 0.0
    %358 = vmatprep.subr.mxu0 0.0
    %359 = vmatpush1.msra.mxu0 0.0
    %360 = vmatprep.subr.mxu0 0.0
    %361 = vmatpush1.msra.mxu0 0.0
    %362 = vmatprep.subr.mxu0 0.0
    %363 = vmatpush1.msra.mxu0 0.0
    %364 = vmatprep.subr.mxu0 0.0
    %365 = vmatpush1.msra.mxu0 0.0
    %366 = vmatprep.subr.mxu0 0.0
    %367 = vmatpush1.msra.mxu0 0.0
    %368 = vmatprep.subr.mxu0 0.0
    %369 = vmatpush1.msra.mxu0 0.0
    %370 = vmatprep.subr.mxu0 0.0
    %371 = vmatpush1.msra.mxu0 0.0
    %372 = vmatprep.subr.mxu0 0.0
    %373 = vmatpush1.msra.mxu0 0.0
    %374 = vmatprep.subr.mxu0 0.0
    %375 = vmatpush1.msra.mxu0 0.0
    %376 = vmatprep.subr.mxu0 0.0
    %377 = vmatpush1.msra.mxu0 0.0
    %378 = vmatprep.subr.mxu0 0.0
    %379 = vmatpush1.msra.mxu0 0.0
    %380 = vmatprep.subr.mxu0 0.0
    %381 = vmatpush1.msra.mxu0 0.0
    %382 = vmatprep.subr.mxu0 0.0
    %383 = vmatpush1.msra.mxu0 0.0
    %384 = vmatprep.subr.mxu0 0.0
    %385 = vmatpush1.msra.mxu0 0.0
    %386 = vmatprep.subr.mxu0 0.0
    %387 = vmatpush1.msra.mxu0 0.0
    %388 = vmatprep.subr.mxu0 0.0
    %389 = vmatpush1.msra.mxu0 0.0
    %390 = vmatprep.subr.mxu0 0.0
    %391 = vmatpush1.msra.mxu0 0.0
    %392 = vmatprep.subr.mxu0 0.0
    %393 = vmatpush1.msra.mxu0 0.0
    %394 = vmatprep.subr.mxu0 0.0
    %395 = vmatpush1.msra.mxu0 0.0
    %396 = vmatprep.mubr.f32.mxu0 0.0
    %v397 = vand.u32 %v94, 4294901760
    %v398 = vsub.f32 %v94, %v397
    %v399 = vand.u32 %v398, 4294901760
    %400 = vmatmul.mubr.f32.gmra.mrb[0].mxu0 %v399
    %v401 = vpop.f32.mrb[0].mxu0
    %v402 = vadd.f32 %v327, %v401
    %v403 = vpop.f32.mrb[0].mxu0
    %404 = vdwg.mxu0
    %405 = vmatprep.subr.mxu0 0.0
    %v406 = vand.u32 %v83, 4294901760
    %v407 = vsub.f32 %v83, %v406
    %v408 = vand.u32 %v407, 4294901760
    %409 = vmatpush1.msra.mxu0 %v408
    %410 = vmatprep.subr.mxu0 0.0
    %v411 = vand.u32 %v84, 4294901760
    %v412 = vsub.f32 %v84, %v411
    %v413 = vand.u32 %v412, 4294901760
    %414 = vmatpush1.msra.mxu0 %v413
    %415 = vmatprep.subr.mxu0 0.0
    %416 = vmatpush1.msra.mxu0 0.0
    %417 = vmatprep.subr.mxu0 0.0
    %418 = vmatpush1.msra.mxu0 0.0
    %419 = vmatprep.subr.mxu0 0.0
    %420 = vmatpush1.msra.mxu0 0.0
    %421 = vmatprep.subr.mxu0 0.0
    %422 = vmatpush1.msra.mxu0 0.0
    %423 = vmatprep.subr.mxu0 0.0
    %424 = vmatpush1.msra.mxu0 0.0
    %425 = vmatprep.subr.mxu0 0.0
    %426 = vmatpush1.msra.mxu0 0.0
    %427 = vmatprep.subr.mxu0 0.0
    %428 = vmatpush1.msra.mxu0 0.0
    %429 = vmatprep.subr.mxu0 0.0
    %430 = vmatpush1.msra.mxu0 0.0
    %431 = vmatprep.subr.mxu0 0.0
    %432 = vmatpush1.msra.mxu0 0.0
    %433 = vmatprep.subr.mxu0 0.0
    %434 = vmatpush1.msra.mxu0 0.0
    %435 = vmatprep.subr.mxu0 0.0
    %436 = vmatpush1.msra.mxu0 0.0
    %437 = vmatprep.subr.mxu0 0.0
    %438 = vmatpush1.msra.mxu0 0.0
    %439 = vmatprep.subr.mxu0 0.0
    %440 = vmatpush1.msra.mxu0 0.0
    %441 = vmatprep.subr.mxu0 0.0
    %442 = vmatpush1.msra.mxu0 0.0
    %443 = vmatprep.subr.mxu0 0.0
    %444 = vmatpush1.msra.mxu0 0.0
    %445 = vmatprep.subr.mxu0 0.0
    %446 = vmatpush1.msra.mxu0 0.0
    %447 = vmatprep.subr.mxu0 0.0
    %448 = vmatpush1.msra.mxu0 0.0
    %449 = vmatprep.subr.mxu0 0.0
    %450 = vmatpush1.msra.mxu0 0.0
    %451 = vmatprep.subr.mxu0 0.0
    %452 = vmatpush1.msra.mxu0 0.0
    %453 = vmatprep.subr.mxu0 0.0
    %454 = vmatpush1.msra.mxu0 0.0
    %455 = vmatprep.subr.mxu0 0.0
    %456 = vmatpush1.msra.mxu0 0.0
    %457 = vmatprep.subr.mxu0 0.0
    %458 = vmatpush1.msra.mxu0 0.0
    %459 = vmatprep.subr.mxu0 0.0
    %460 = vmatpush1.msra.mxu0 0.0
    %461 = vmatprep.subr.mxu0 0.0
    %462 = vmatpush1.msra.mxu0 0.0
    %463 = vmatprep.subr.mxu0 0.0
    %464 = vmatpush1.msra.mxu0 0.0
    %465 = vmatprep.subr.mxu0 0.0
    %466 = vmatpush1.msra.mxu0 0.0
    %467 = vmatprep.subr.mxu0 0.0
    %468 = vmatpush1.msra.mxu0 0.0
    %469 = vmatprep.subr.mxu0 0.0
    %470 = vmatpush1.msra.mxu0 0.0
    %471 = vmatprep.subr.mxu0 0.0
    %472 = vmatpush1.msra.mxu0 0.0
    %473 = vmatprep.subr.mxu0 0.0
    %474 = vmatpush1.msra.mxu0 0.0
    %475 = vmatprep.mubr.f32.mxu0 0.0
    %v476 = vand.u32 %v94, 4294901760
    %477 = vmatmul.mubr.f32.gmra.mrb[0].mxu0 %v476
    %v478 = vpop.f32.mrb[0].mxu0
    %v479 = vadd.f32 %v402, %v478
    %v480 = vpop.f32.mrb[0].mxu0
    %481 = vdwg.mxu0
    %482 = vmatprep.subr.mxu0 0.0
    %v483 = vand.u32 %v83, 4294901760
    %484 = vmatpush1.msra.mxu0 %v483
    %485 = vmatprep.subr.mxu0 0.0
    %v486 = vand.u32 %v84, 4294901760
    %487 = vmatpush1.msra.mxu0 %v486
    %488 = vmatprep.subr.mxu0 0.0
    %489 = vmatpush1.msra.mxu0 0.0
    %490 = vmatprep.subr.mxu0 0.0
    %491 = vmatpush1.msra.mxu0 0.0
    %492 = vmatprep.subr.mxu0 0.0
    %493 = vmatpush1.msra.mxu0 0.0
    %494 = vmatprep.subr.mxu0 0.0
    %495 = vmatpush1.msra.mxu0 0.0
    %496 = vmatprep.subr.mxu0 0.0
    %497 = vmatpush1.msra.mxu0 0.0
    %498 = vmatprep.subr.mxu0 0.0
    %499 = vmatpush1.msra.mxu0 0.0
    %500 = vmatprep.subr.mxu0 0.0
    %501 = vmatpush1.msra.mxu0 0.0
    %502 = vmatprep.subr.mxu0 0.0
    %503 = vmatpush1.msra.mxu0 0.0
    %504 = vmatprep.subr.mxu0 0.0
    %505 = vmatpush1.msra.mxu0 0.0
    %506 = vmatprep.subr.mxu0 0.0
    %507 = vmatpush1.msra.mxu0 0.0
    %508 = vmatprep.subr.mxu0 0.0
    %509 = vmatpush1.msra.mxu0 0.0
    %510 = vmatprep.subr.mxu0 0.0
    %511 = vmatpush1.msra.mxu0 0.0
    %512 = vmatprep.subr.mxu0 0.0
    %513 = vmatpush1.msra.mxu0 0.0
    %514 = vmatprep.subr.mxu0 0.0
    %515 = vmatpush1.msra.mxu0 0.0
    %516 = vmatprep.subr.mxu0 0.0
    %517 = vmatpush1.msra.mxu0 0.0
    %518 = vmatprep.subr.mxu0 0.0
    %519 = vmatpush1.msra.mxu0 0.0
    %520 = vmatprep.subr.mxu0 0.0
    %521 = vmatpush1.msra.mxu0 0.0
    %522 = vmatprep.subr.mxu0 0.0
    %523 = vmatpush1.msra.mxu0 0.0
    %524 = vmatprep.subr.mxu0 0.0
    %525 = vmatpush1.msra.mxu0 0.0
    %526 = vmatprep.subr.mxu0 0.0
    %527 = vmatpush1.msra.mxu0 0.0
    %528 = vmatprep.subr.mxu0 0.0
    %529 = vmatpush1.msra.mxu0 0.0
    %530 = vmatprep.subr.mxu0 0.0
    %531 = vmatpush1.msra.mxu0 0.0
    %532 = vmatprep.subr.mxu0 0.0
    %533 = vmatpush1.msra.mxu0 0.0
    %534 = vmatprep.subr.mxu0 0.0
    %535 = vmatpush1.msra.mxu0 0.0
    %536 = vmatprep.subr.mxu0 0.0
    %537 = vmatpush1.msra.mxu0 0.0
    %538 = vmatprep.subr.mxu0 0.0
    %539 = vmatpush1.msra.mxu0 0.0
    %540 = vmatprep.subr.mxu0 0.0
    %541 = vmatpush1.msra.mxu0 0.0
    %542 = vmatprep.subr.mxu0 0.0
    %543 = vmatpush1.msra.mxu0 0.0
    %544 = vmatprep.subr.mxu0 0.0
    %545 = vmatpush1.msra.mxu0 0.0
    %546 = vmatprep.subr.mxu0 0.0
    %547 = vmatpush1.msra.mxu0 0.0
    %548 = vmatprep.mubr.f32.mxu0 0.0
    %v549 = vand.u32 %v94, 4294901760
    %550 = vmatmul.mubr.f32.gmra.mrb[0].mxu0 %v549
    %v551 = vpop.f32.mrb[0].mxu0
    %v552 = vadd.f32 %v479, %v551
    %v553 = vpop.f32.mrb[0].mxu0
    %554 = vdwg.mxu0
    %v555 = vmax.f32 %v552, 0.0
    %v556 = vld [vmem:[#allocation7] sm:$0xff]
    %v557 = vld [vmem:[#allocation7 + $0x8] sm:$0xff]
    %v558 = vld [vmem:[#allocation7 + $0x10] sm:$0xff]
    %v559 = vld [vmem:[#allocation7 + $0x18] sm:$0xff]
    %v560 = vld [vmem:[#allocation7 + $0x20] sm:$0xff]
    %v561 = vld [vmem:[#allocation7 + $0x28] sm:$0xff]
    %v562 = vld [vmem:[#allocation7 + $0x30] sm:$0xff]
    %v563 = vld [vmem:[#allocation7 + $0x38] sm:$0xff]
    %v564 = vld [vmem:[#allocation7 + $0x40] sm:$0xff]
    %v565 = vld [vmem:[#allocation7 + $0x48] sm:$0xff]
    %v566 = vld [vmem:[#allocation7 + $0x50] sm:$0xff]
    %v567 = vld [vmem:[#allocation7 + $0x58] sm:$0xff]
    %v568 = vld [vmem:[#allocation7 + $0x60] sm:$0xff]
    %v569 = vld [vmem:[#allocation7 + $0x68] sm:$0xff]
    %v570 = vld [vmem:[#allocation7 + $0x70] sm:$0xff]
    %v571 = vld [vmem:[#allocation7 + $0x78] sm:$0xff]
    %v572 = vld [vmem:[%s4] sm:$0x1]
    %v574 = vlaneseq
    %v575 = vshrl.u32 %v574, 7
    %v576 = vsub.s32 0, %v575
    %v577 = vrot.slane %v572, %v576
    %579 = vmatprep.subr.mxu0 0.0
    %v580 = vand.u32 %v556, 4294901760
    %581 = vmatpush1.msra.mxu0 %v580
    %582 = vmatprep.subr.mxu0 0.0
    %v583 = vand.u32 %v557, 4294901760
    %584 = vmatpush1.msra.mxu0 %v583
    %585 = vmatprep.subr.mxu0 0.0
    %v586 = vand.u32 %v558, 4294901760
    %587 = vmatpush1.msra.mxu0 %v586
    %588 = vmatprep.subr.mxu0 0.0
    %v589 = vand.u32 %v559, 4294901760
    %590 = vmatpush1.msra.mxu0 %v589
    %591 = vmatprep.subr.mxu0 0.0
    %v592 = vand.u32 %v560, 4294901760
    %593 = vmatpush1.msra.mxu0 %v592
    %594 = vmatprep.subr.mxu0 0.0
    %v595 = vand.u32 %v561, 4294901760
    %596 = vmatpush1.msra.mxu0 %v595
    %597 = vmatprep.subr.mxu0 0.0
    %v598 = vand.u32 %v562, 4294901760
    %599 = vmatpush1.msra.mxu0 %v598
    %600 = vmatprep.subr.mxu0 0.0
    %v601 = vand.u32 %v563, 4294901760
    %602 = vmatpush1.msra.mxu0 %v601
    %603 = vmatprep.subr.mxu0 0.0
    %v604 = vand.u32 %v564, 4294901760
    %605 = vmatpush1.msra.mxu0 %v604
    %606 = vmatprep.subr.mxu0 0.0
    %v607 = vand.u32 %v565, 4294901760
    %608 = vmatpush1.msra.mxu0 %v607
    %609 = vmatprep.subr.mxu0 0.0
    %v610 = vand.u32 %v566, 4294901760
    %611 = vmatpush1.msra.mxu0 %v610
    %612 = vmatprep.subr.mxu0 0.0
    %v613 = vand.u32 %v567, 4294901760
    %614 = vmatpush1.msra.mxu0 %v613
    %615 = vmatprep.subr.mxu0 0.0
    %v616 = vand.u32 %v568, 4294901760
    %617 = vmatpush1.msra.mxu0 %v616
    %618 = vmatprep.subr.mxu0 0.0
    %v619 = vand.u32 %v569, 4294901760
    %620 = vmatpush1.msra.mxu0 %v619
    %621 = vmatprep.subr.mxu0 0.0
    %v622 = vand.u32 %v570, 4294901760
    %623 = vmatpush1.msra.mxu0 %v622
    %624 = vmatprep.subr.mxu0 0.0
    %v625 = vand.u32 %v571, 4294901760
    %626 = vmatpush1.msra.mxu0 %v625
    %627 = vmatprep.subr.mxu0 0.0
    %628 = vmatpush1.msra.mxu0 0.0
    %629 = vmatprep.subr.mxu0 0.0
    %630 = vmatpush1.msra.mxu0 0.0
    %631 = vmatprep.subr.mxu0 0.0
    %632 = vmatpush1.msra.mxu0 0.0
    %633 = vmatprep.subr.mxu0 0.0
    %634 = vmatpush1.msra.mxu0 0.0
    %635 = vmatprep.subr.mxu0 0.0
    %636 = vmatpush1.msra.mxu0 0.0
    %637 = vmatprep.subr.mxu0 0.0
    %638 = vmatpush1.msra.mxu0 0.0
    %639 = vmatprep.subr.mxu0 0.0
    %640 = vmatpush1.msra.mxu0 0.0
    %641 = vmatprep.subr.mxu0 0.0
    %642 = vmatpush1.msra.mxu0 0.0
    %643 = vmatprep.subr.mxu0 0.0
    %644 = vmatpush1.msra.mxu0 0.0
    %645 = vmatprep.subr.mxu0 0.0
    %646 = vmatpush1.msra.mxu0 0.0
    %647 = vmatprep.subr.mxu0 0.0
    %648 = vmatpush1.msra.mxu0 0.0
    %649 = vmatprep.subr.mxu0 0.0
    %650 = vmatpush1.msra.mxu0 0.0
    %651 = vmatprep.subr.mxu0 0.0
    %652 = vmatpush1.msra.mxu0 0.0
    %653 = vmatprep.subr.mxu0 0.0
    %654 = vmatpush1.msra.mxu0 0.0
    %655 = vmatprep.subr.mxu0 0.0
    %656 = vmatpush1.msra.mxu0 0.0
    %657 = vmatprep.subr.mxu0 0.0
    %658 = vmatpush1.msra.mxu0 0.0
    %659 = vmatprep.mubr.f32.mxu0 0.0
    %v660 = vand.u32 %v555, 4294901760
    %v661 = vsub.f32 %v555, %v660
    %v662 = vand.u32 %v661, 4294901760
    %v663 = vsub.f32 %v661, %v662
    %v664 = vand.u32 %v663, 4294901760
    %665 = vmatmul.mubr.f32.gmra.mrb[0].mxu0 %v664
    %v666 = vpop.f32.mrb[0].mxu0
    %v667 = vadd.f32 %v577, %v666
    %v668 = vpop.f32.mrb[0].mxu0
    %669 = vdwg.mxu0
    %670 = vmatprep.subr.mxu0 0.0
    %v671 = vand.u32 %v556, 4294901760
    %v672 = vsub.f32 %v556, %v671
    %v673 = vand.u32 %v672, 4294901760
    %v674 = vsub.f32 %v672, %v673
    %v675 = vand.u32 %v674, 4294901760
    %676 = vmatpush1.msra.mxu0 %v675
    %677 = vmatprep.subr.mxu0 0.0
    %v678 = vand.u32 %v557, 4294901760
    %v679 = vsub.f32 %v557, %v678
    %v680 = vand.u32 %v679, 4294901760
    %v681 = vsub.f32 %v679, %v680
    %v682 = vand.u32 %v681, 4294901760
    %683 = vmatpush1.msra.mxu0 %v682
    %684 = vmatprep.subr.mxu0 0.0
    %v685 = vand.u32 %v558, 4294901760
    %v686 = vsub.f32 %v558, %v685
    %v687 = vand.u32 %v686, 4294901760
    %v688 = vsub.f32 %v686, %v687
    %v689 = vand.u32 %v688, 4294901760
    %690 = vmatpush1.msra.mxu0 %v689
    %691 = vmatprep.subr.mxu0 0.0
    %v692 = vand.u32 %v559, 4294901760
    %v693 = vsub.f32 %v559, %v692
    %v694 = vand.u32 %v693, 4294901760
    %v695 = vsub.f32 %v693, %v694
    %v696 = vand.u32 %v695, 4294901760
    %697 = vmatpush1.msra.mxu0 %v696
    %698 = vmatprep.subr.mxu0 0.0
    %v699 = vand.u32 %v560, 4294901760
    %v700 = vsub.f32 %v560, %v699
    %v701 = vand.u32 %v700, 4294901760
    %v702 = vsub.f32 %v700, %v701
    %v703 = vand.u32 %v702, 4294901760
    %704 = vmatpush1.msra.mxu0 %v703
    %705 = vmatprep.subr.mxu0 0.0
    %v706 = vand.u32 %v561, 4294901760
    %v707 = vsub.f32 %v561, %v706
    %v708 = vand.u32 %v707, 4294901760
    %v709 = vsub.f32 %v707, %v708
    %v710 = vand.u32 %v709, 4294901760
    %711 = vmatpush1.msra.mxu0 %v710
    %712 = vmatprep.subr.mxu0 0.0
    %v713 = vand.u32 %v562, 4294901760
    %v714 = vsub.f32 %v562, %v713
    %v715 = vand.u32 %v714, 4294901760
    %v716 = vsub.f32 %v714, %v715
    %v717 = vand.u32 %v716, 4294901760
    %718 = vmatpush1.msra.mxu0 %v717
    %719 = vmatprep.subr.mxu0 0.0
    %v720 = vand.u32 %v563, 4294901760
    %v721 = vsub.f32 %v563, %v720
    %v722 = vand.u32 %v721, 4294901760
    %v723 = vsub.f32 %v721, %v722
    %v724 = vand.u32 %v723, 4294901760
    %725 = vmatpush1.msra.mxu0 %v724
    %726 = vmatprep.subr.mxu0 0.0
    %v727 = vand.u32 %v564, 4294901760
    %v728 = vsub.f32 %v564, %v727
    %v729 = vand.u32 %v728, 4294901760
    %v730 = vsub.f32 %v728, %v729
    %v731 = vand.u32 %v730, 4294901760
    %732 = vmatpush1.msra.mxu0 %v731
    %733 = vmatprep.subr.mxu0 0.0
    %v734 = vand.u32 %v565, 4294901760
    %v735 = vsub.f32 %v565, %v734
    %v736 = vand.u32 %v735, 4294901760
    %v737 = vsub.f32 %v735, %v736
    %v738 = vand.u32 %v737, 4294901760
    %739 = vmatpush1.msra.mxu0 %v738
    %740 = vmatprep.subr.mxu0 0.0
    %v741 = vand.u32 %v566, 4294901760
    %v742 = vsub.f32 %v566, %v741
    %v743 = vand.u32 %v742, 4294901760
    %v744 = vsub.f32 %v742, %v743
    %v745 = vand.u32 %v744, 4294901760
    %746 = vmatpush1.msra.mxu0 %v745
    %747 = vmatprep.subr.mxu0 0.0
    %v748 = vand.u32 %v567, 4294901760
    %v749 = vsub.f32 %v567, %v748
    %v750 = vand.u32 %v749, 4294901760
    %v751 = vsub.f32 %v749, %v750
    %v752 = vand.u32 %v751, 4294901760
    %753 = vmatpush1.msra.mxu0 %v752
    %754 = vmatprep.subr.mxu0 0.0
    %v755 = vand.u32 %v568, 4294901760
    %v756 = vsub.f32 %v568, %v755
    %v757 = vand.u32 %v756, 4294901760
    %v758 = vsub.f32 %v756, %v757
    %v759 = vand.u32 %v758, 4294901760
    %760 = vmatpush1.msra.mxu0 %v759
    %761 = vmatprep.subr.mxu0 0.0
    %v762 = vand.u32 %v569, 4294901760
    %v763 = vsub.f32 %v569, %v762
    %v764 = vand.u32 %v763, 4294901760
    %v765 = vsub.f32 %v763, %v764
    %v766 = vand.u32 %v765, 4294901760
    %767 = vmatpush1.msra.mxu0 %v766
    %768 = vmatprep.subr.mxu0 0.0
    %v769 = vand.u32 %v570, 4294901760
    %v770 = vsub.f32 %v570, %v769
    %v771 = vand.u32 %v770, 4294901760
    %v772 = vsub.f32 %v770, %v771
    %v773 = vand.u32 %v772, 4294901760
    %774 = vmatpush1.msra.mxu0 %v773
    %775 = vmatprep.subr.mxu0 0.0
    %v776 = vand.u32 %v571, 4294901760
    %v777 = vsub.f32 %v571, %v776
    %v778 = vand.u32 %v777, 4294901760
    %v779 = vsub.f32 %v777, %v778
    %v780 = vand.u32 %v779, 4294901760
    %781 = vmatpush1.msra.mxu0 %v780
    %782 = vmatprep.subr.mxu0 0.0
    %783 = vmatpush1.msra.mxu0 0.0
    %784 = vmatprep.subr.mxu0 0.0
    %785 = vmatpush1.msra.mxu0 0.0
    %786 = vmatprep.subr.mxu0 0.0
    %787 = vmatpush1.msra.mxu0 0.0
    %788 = vmatprep.subr.mxu0 0.0
    %789 = vmatpush1.msra.mxu0 0.0
    %790 = vmatprep.subr.mxu0 0.0
    %791 = vmatpush1.msra.mxu0 0.0
    %792 = vmatprep.subr.mxu0 0.0
    %793 = vmatpush1.msra.mxu0 0.0
    %794 = vmatprep.subr.mxu0 0.0
    %795 = vmatpush1.msra.mxu0 0.0
    %796 = vmatprep.subr.mxu0 0.0
    %797 = vmatpush1.msra.mxu0 0.0
    %798 = vmatprep.subr.mxu0 0.0
    %799 = vmatpush1.msra.mxu0 0.0
    %800 = vmatprep.subr.mxu0 0.0
    %801 = vmatpush1.msra.mxu0 0.0
    %802 = vmatprep.subr.mxu0 0.0
    %803 = vmatpush1.msra.mxu0 0.0
    %804 = vmatprep.subr.mxu0 0.0
    %805 = vmatpush1.msra.mxu0 0.0
    %806 = vmatprep.subr.mxu0 0.0
    %807 = vmatpush1.msra.mxu0 0.0
    %808 = vmatprep.subr.mxu0 0.0
    %809 = vmatpush1.msra.mxu0 0.0
    %810 = vmatprep.subr.mxu0 0.0
    %811 = vmatpush1.msra.mxu0 0.0
    %812 = vmatprep.subr.mxu0 0.0
    %813 = vmatpush1.msra.mxu0 0.0
    %814 = vmatprep.mubr.f32.mxu0 0.0
    %v815 = vand.u32 %v555, 4294901760
    %816 = vmatmul.mubr.f32.gmra.mrb[0].mxu0 %v815
    %v817 = vpop.f32.mrb[0].mxu0
    %v818 = vadd.f32 %v667, %v817
    %v819 = vpop.f32.mrb[0].mxu0
    %820 = vdwg.mxu0
    %821 = vmatprep.subr.mxu0 0.0
    %v822 = vand.u32 %v556, 4294901760
    %v823 = vsub.f32 %v556, %v822
    %824 = vmatpush1.msra.mxu0 %v823
    %825 = vmatprep.subr.mxu0 0.0
    %v826 = vand.u32 %v557, 4294901760
    %v827 = vsub.f32 %v557, %v826
    %828 = vmatpush1.msra.mxu0 %v827
    %829 = vmatprep.subr.mxu0 0.0
    %v830 = vand.u32 %v558, 4294901760
    %v831 = vsub.f32 %v558, %v830
    %832 = vmatpush1.msra.mxu0 %v831
    %833 = vmatprep.subr.mxu0 0.0
    %v834 = vand.u32 %v559, 4294901760
    %v835 = vsub.f32 %v559, %v834
    %836 = vmatpush1.msra.mxu0 %v835
    %837 = vmatprep.subr.mxu0 0.0
    %v838 = vand.u32 %v560, 4294901760
    %v839 = vsub.f32 %v560, %v838
    %840 = vmatpush1.msra.mxu0 %v839
    %841 = vmatprep.subr.mxu0 0.0
    %v842 = vand.u32 %v561, 4294901760
    %v843 = vsub.f32 %v561, %v842
    %844 = vmatpush1.msra.mxu0 %v843
    %845 = vmatprep.subr.mxu0 0.0
    %v846 = vand.u32 %v562, 4294901760
    %v847 = vsub.f32 %v562, %v846
    %848 = vmatpush1.msra.mxu0 %v847
    %849 = vmatprep.subr.mxu0 0.0
    %v850 = vand.u32 %v563, 4294901760
    %v851 = vsub.f32 %v563, %v850
    %852 = vmatpush1.msra.mxu0 %v851
    %853 = vmatprep.subr.mxu0 0.0
    %v854 = vand.u32 %v564, 4294901760
    %v855 = vsub.f32 %v564, %v854
    %856 = vmatpush1.msra.mxu0 %v855
    %857 = vmatprep.subr.mxu0 0.0
    %v858 = vand.u32 %v565, 4294901760
    %v859 = vsub.f32 %v565, %v858
    %860 = vmatpush1.msra.mxu0 %v859
    %861 = vmatprep.subr.mxu0 0.0
    %v862 = vand.u32 %v566, 4294901760
    %v863 = vsub.f32 %v566, %v862
    %864 = vmatpush1.msra.mxu0 %v863
    %865 = vmatprep.subr.mxu0 0.0
    %v866 = vand.u32 %v567, 4294901760
    %v867 = vsub.f32 %v567, %v866
    %868 = vmatpush1.msra.mxu0 %v867
    %869 = vmatprep.subr.mxu0 0.0
    %v870 = vand.u32 %v568, 4294901760
    %v871 = vsub.f32 %v568, %v870
    %872 = vmatpush1.msra.mxu0 %v871
    %873 = vmatprep.subr.mxu0 0.0
    %v874 = vand.u32 %v569, 4294901760
    %v875 = vsub.f32 %v569, %v874
    %876 = vmatpush1.msra.mxu0 %v875
    %877 = vmatprep.subr.mxu0 0.0
    %v878 = vand.u32 %v570, 4294901760
    %v879 = vsub.f32 %v570, %v878
    %880 = vmatpush1.msra.mxu0 %v879
    %881 = vmatprep.subr.mxu0 0.0
    %v882 = vand.u32 %v571, 4294901760
    %v883 = vsub.f32 %v571, %v882
    %884 = vmatpush1.msra.mxu0 %v883
    %885 = vmatprep.subr.mxu0 0.0
    %886 = vmatpush1.msra.mxu0 0.0
    %887 = vmatprep.subr.mxu0 0.0
    %888 = vmatpush1.msra.mxu0 0.0
    %889 = vmatprep.subr.mxu0 0.0
    %890 = vmatpush1.msra.mxu0 0.0
    %891 = vmatprep.subr.mxu0 0.0
    %892 = vmatpush1.msra.mxu0 0.0
    %893 = vmatprep.subr.mxu0 0.0
    %894 = vmatpush1.msra.mxu0 0.0
    %895 = vmatprep.subr.mxu0 0.0
    %896 = vmatpush1.msra.mxu0 0.0
    %897 = vmatprep.subr.mxu0 0.0
    %898 = vmatpush1.msra.mxu0 0.0
    %899 = vmatprep.subr.mxu0 0.0
    %900 = vmatpush1.msra.mxu0 0.0
    %901 = vmatprep.subr.mxu0 0.0
    %902 = vmatpush1.msra.mxu0 0.0
    %903 = vmatprep.subr.mxu0 0.0
    %904 = vmatpush1.msra.mxu0 0.0
    %905 = vmatprep.subr.mxu0 0.0
    %906 = vmatpush1.msra.mxu0 0.0
    %907 = vmatprep.subr.mxu0 0.0
    %908 = vmatpush1.msra.mxu0 0.0
    %909 = vmatprep.subr.mxu0 0.0
    %910 = vmatpush1.msra.mxu0 0.0
    %911 = vmatprep.subr.mxu0 0.0
    %912 = vmatpush1.msra.mxu0 0.0
    %913 = vmatprep.subr.mxu0 0.0
    %914 = vmatpush1.msra.mxu0 0.0
    %915 = vmatprep.subr.mxu0 0.0
    %916 = vmatpush1.msra.mxu0 0.0
    %917 = vmatprep.mubr.f32.mxu0 0.0
    %v918 = vand.u32 %v555, 4294901760
    %v919 = vsub.f32 %v555, %v918
    %920 = vmatmul.mubr.f32.gmra.mrb[0].mxu0 %v919
    %v921 = vpop.f32.mrb[0].mxu0
    %v922 = vadd.f32 %v818, %v921
    %v923 = vpop.f32.mrb[0].mxu0
    %924 = vdwg.mxu0
    %925 = vmatprep.subr.mxu0 0.0
    %v926 = vand.u32 %v556, 4294901760
    %927 = vmatpush1.msra.mxu0 %v926
    %928 = vmatprep.subr.mxu0 0.0
    %v929 = vand.u32 %v557, 4294901760
    %930 = vmatpush1.msra.mxu0 %v929
    %931 = vmatprep.subr.mxu0 0.0
    %v932 = vand.u32 %v558, 4294901760
    %933 = vmatpush1.msra.mxu0 %v932
    %934 = vmatprep.subr.mxu0 0.0
    %v935 = vand.u32 %v559, 4294901760
    %936 = vmatpush1.msra.mxu0 %v935
    %937 = vmatprep.subr.mxu0 0.0
    %v938 = vand.u32 %v560, 4294901760
    %939 = vmatpush1.msra.mxu0 %v938
    %940 = vmatprep.subr.mxu0 0.0
    %v941 = vand.u32 %v561, 4294901760
    %942 = vmatpush1.msra.mxu0 %v941
    %943 = vmatprep.subr.mxu0 0.0
    %v944 = vand.u32 %v562, 4294901760
    %945 = vmatpush1.msra.mxu0 %v944
    %946 = vmatprep.subr.mxu0 0.0
    %v947 = vand.u32 %v563, 4294901760
    %948 = vmatpush1.msra.mxu0 %v947
    %949 = vmatprep.subr.mxu0 0.0
    %v950 = vand.u32 %v564, 4294901760
    %951 = vmatpush1.msra.mxu0 %v950
    %952 = vmatprep.subr.mxu0 0.0
    %v953 = vand.u32 %v565, 4294901760
    %954 = vmatpush1.msra.mxu0 %v953
    %955 = vmatprep.subr.mxu0 0.0
    %v956 = vand.u32 %v566, 4294901760
    %957 = vmatpush1.msra.mxu0 %v956
    %958 = vmatprep.subr.mxu0 0.0
    %v959 = vand.u32 %v567, 4294901760
    %960 = vmatpush1.msra.mxu0 %v959
    %961 = vmatprep.subr.mxu0 0.0
    %v962 = vand.u32 %v568, 4294901760
    %963 = vmatpush1.msra.mxu0 %v962
    %964 = vmatprep.subr.mxu0 0.0
    %v965 = vand.u32 %v569, 4294901760
    %966 = vmatpush1.msra.mxu0 %v965
    %967 = vmatprep.subr.mxu0 0.0
    %v968 = vand.u32 %v570, 4294901760
    %969 = vmatpush1.msra.mxu0 %v968
    %970 = vmatprep.subr.mxu0 0.0
    %v971 = vand.u32 %v571, 4294901760
    %972 = vmatpush1.msra.mxu0 %v971
    %973 = vmatprep.subr.mxu0 0.0
    %974 = vmatpush1.msra.mxu0 0.0
    %975 = vmatprep.subr.mxu0 0.0
    %976 = vmatpush1.msra.mxu0 0.0
    %977 = vmatprep.subr.mxu0 0.0
    %978 = vmatpush1.msra.mxu0 0.0
    %979 = vmatprep.subr.mxu0 0.0
    %980 = vmatpush1.msra.mxu0 0.0
    %981 = vmatprep.subr.mxu0 0.0
    %982 = vmatpush1.msra.mxu0 0.0
    %983 = vmatprep.subr.mxu0 0.0
    %984 = vmatpush1.msra.mxu0 0.0
    %985 = vmatprep.subr.mxu0 0.0
    %986 = vmatpush1.msra.mxu0 0.0
    %987 = vmatprep.subr.mxu0 0.0
    %988 = vmatpush1.msra.mxu0 0.0
    %989 = vmatprep.subr.mxu0 0.0
    %990 = vmatpush1.msra.mxu0 0.0
    %991 = vmatprep.subr.mxu0 0.0
    %992 = vmatpush1.msra.mxu0 0.0
    %993 = vmatprep.subr.mxu0 0.0
    %994 = vmatpush1.msra.mxu0 0.0
    %995 = vmatprep.subr.mxu0 0.0
    %996 = vmatpush1.msra.mxu0 0.0
    %997 = vmatprep.subr.mxu0 0.0
    %998 = vmatpush1.msra.mxu0 0.0
    %999 = vmatprep.subr.mxu0 0.0
    %1000 = vmatpush1.msra.mxu0 0.0
    %1001 = vmatprep.subr.mxu0 0.0
    %1002 = vmatpush1.msra.mxu0 0.0
    %1003 = vmatprep.subr.mxu0 0.0
    %1004 = vmatpush1.msra.mxu0 0.0
    %1005 = vmatprep.mubr.f32.mxu0 0.0
    %v1006 = vand.u32 %v555, 4294901760
    %v1007 = vsub.f32 %v555, %v1006
    %v1008 = vand.u32 %v1007, 4294901760
    %1009 = vmatmul.mubr.f32.gmra.mrb[0].mxu0 %v1008
    %v1010 = vpop.f32.mrb[0].mxu0
    %v1011 = vadd.f32 %v922, %v1010
    %v1012 = vpop.f32.mrb[0].mxu0
    %1013 = vdwg.mxu0
    %1014 = vmatprep.subr.mxu0 0.0
    %v1015 = vand.u32 %v556, 4294901760
    %v1016 = vsub.f32 %v556, %v1015
    %v1017 = vand.u32 %v1016, 4294901760
    %1018 = vmatpush1.msra.mxu0 %v1017
    %1019 = vmatprep.subr.mxu0 0.0
    %v1020 = vand.u32 %v557, 4294901760
    %v1021 = vsub.f32 %v557, %v1020
    %v1022 = vand.u32 %v1021, 4294901760
    %1023 = vmatpush1.msra.mxu0 %v1022
    %1024 = vmatprep.subr.mxu0 0.0
    %v1025 = vand.u32 %v558, 4294901760
    %v1026 = vsub.f32 %v558, %v1025
    %v1027 = vand.u32 %v1026, 4294901760
    %1028 = vmatpush1.msra.mxu0 %v1027
    %1029 = vmatprep.subr.mxu0 0.0
    %v1030 = vand.u32 %v559, 4294901760
    %v1031 = vsub.f32 %v559, %v1030
    %v1032 = vand.u32 %v1031, 4294901760
    %1033 = vmatpush1.msra.mxu0 %v1032
    %1034 = vmatprep.subr.mxu0 0.0
    %v1035 = vand.u32 %v560, 4294901760
    %v1036 = vsub.f32 %v560, %v1035
    %v1037 = vand.u32 %v1036, 4294901760
    %1038 = vmatpush1.msra.mxu0 %v1037
    %1039 = vmatprep.subr.mxu0 0.0
    %v1040 = vand.u32 %v561, 4294901760
    %v1041 = vsub.f32 %v561, %v1040
    %v1042 = vand.u32 %v1041, 4294901760
    %1043 = vmatpush1.msra.mxu0 %v1042
    %1044 = vmatprep.subr.mxu0 0.0
    %v1045 = vand.u32 %v562, 4294901760
    %v1046 = vsub.f32 %v562, %v1045
    %v1047 = vand.u32 %v1046, 4294901760
    %1048 = vmatpush1.msra.mxu0 %v1047
    %1049 = vmatprep.subr.mxu0 0.0
    %v1050 = vand.u32 %v563, 4294901760
    %v1051 = vsub.f32 %v563, %v1050
    %v1052 = vand.u32 %v1051, 4294901760
    %1053 = vmatpush1.msra.mxu0 %v1052
    %1054 = vmatprep.subr.mxu0 0.0
    %v1055 = vand.u32 %v564, 4294901760
    %v1056 = vsub.f32 %v564, %v1055
    %v1057 = vand.u32 %v1056, 4294901760
    %1058 = vmatpush1.msra.mxu0 %v1057
    %1059 = vmatprep.subr.mxu0 0.0
    %v1060 = vand.u32 %v565, 4294901760
    %v1061 = vsub.f32 %v565, %v1060
    %v1062 = vand.u32 %v1061, 4294901760
    %1063 = vmatpush1.msra.mxu0 %v1062
    %1064 = vmatprep.subr.mxu0 0.0
    %v1065 = vand.u32 %v566, 4294901760
    %v1066 = vsub.f32 %v566, %v1065
    %v1067 = vand.u32 %v1066, 4294901760
    %1068 = vmatpush1.msra.mxu0 %v1067
    %1069 = vmatprep.subr.mxu0 0.0
    %v1070 = vand.u32 %v567, 4294901760
    %v1071 = vsub.f32 %v567, %v1070
    %v1072 = vand.u32 %v1071, 4294901760
    %1073 = vmatpush1.msra.mxu0 %v1072
    %1074 = vmatprep.subr.mxu0 0.0
    %v1075 = vand.u32 %v568, 4294901760
    %v1076 = vsub.f32 %v568, %v1075
    %v1077 = vand.u32 %v1076, 4294901760
    %1078 = vmatpush1.msra.mxu0 %v1077
    %1079 = vmatprep.subr.mxu0 0.0
    %v1080 = vand.u32 %v569, 4294901760
    %v1081 = vsub.f32 %v569, %v1080
    %v1082 = vand.u32 %v1081, 4294901760
    %1083 = vmatpush1.msra.mxu0 %v1082
    %1084 = vmatprep.subr.mxu0 0.0
    %v1085 = vand.u32 %v570, 4294901760
    %v1086 = vsub.f32 %v570, %v1085
    %v1087 = vand.u32 %v1086, 4294901760
    %1088 = vmatpush1.msra.mxu0 %v1087
    %1089 = vmatprep.subr.mxu0 0.0
    %v1090 = vand.u32 %v571, 4294901760
    %v1091 = vsub.f32 %v571, %v1090
    %v1092 = vand.u32 %v1091, 4294901760
    %1093 = vmatpush1.msra.mxu0 %v1092
    %1094 = vmatprep.subr.mxu0 0.0
    %1095 = vmatpush1.msra.mxu0 0.0
    %1096 = vmatprep.subr.mxu0 0.0
    %1097 = vmatpush1.msra.mxu0 0.0
    %1098 = vmatprep.subr.mxu0 0.0
    %1099 = vmatpush1.msra.mxu0 0.0
    %1100 = vmatprep.subr.mxu0 0.0
    %1101 = vmatpush1.msra.mxu0 0.0
    %1102 = vmatprep.subr.mxu0 0.0
    %1103 = vmatpush1.msra.mxu0 0.0
    %1104 = vmatprep.subr.mxu0 0.0
    %1105 = vmatpush1.msra.mxu0 0.0
    %1106 = vmatprep.subr.mxu0 0.0
    %1107 = vmatpush1.msra.mxu0 0.0
    %1108 = vmatprep.subr.mxu0 0.0
    %1109 = vmatpush1.msra.mxu0 0.0
    %1110 = vmatprep.subr.mxu0 0.0
    %1111 = vmatpush1.msra.mxu0 0.0
    %1112 = vmatprep.subr.mxu0 0.0
    %1113 = vmatpush1.msra.mxu0 0.0
    %1114 = vmatprep.subr.mxu0 0.0
    %1115 = vmatpush1.msra.mxu0 0.0
    %1116 = vmatprep.subr.mxu0 0.0
    %1117 = vmatpush1.msra.mxu0 0.0
    %1118 = vmatprep.subr.mxu0 0.0
    %1119 = vmatpush1.msra.mxu0 0.0
    %1120 = vmatprep.subr.mxu0 0.0
    %1121 = vmatpush1.msra.mxu0 0.0
    %1122 = vmatprep.subr.mxu0 0.0
    %1123 = vmatpush1.msra.mxu0 0.0
    %1124 = vmatprep.subr.mxu0 0.0
    %1125 = vmatpush1.msra.mxu0 0.0
    %1126 = vmatprep.mubr.f32.mxu0 0.0
    %v1127 = vand.u32 %v555, 4294901760
    %1128 = vmatmul.mubr.f32.gmra.mrb[0].mxu0 %v1127
    %v1129 = vpop.f32.mrb[0].mxu0
    %v1130 = vadd.f32 %v1011, %v1129
    %v1131 = vpop.f32.mrb[0].mxu0
    %1132 = vdwg.mxu0
    %1133 = vmatprep.subr.mxu0 0.0
    %v1134 = vand.u32 %v556, 4294901760
    %1135 = vmatpush1.msra.mxu0 %v1134
    %1136 = vmatprep.subr.mxu0 0.0
    %v1137 = vand.u32 %v557, 4294901760
    %1138 = vmatpush1.msra.mxu0 %v1137
    %1139 = vmatprep.subr.mxu0 0.0
    %v1140 = vand.u32 %v558, 4294901760
    %1141 = vmatpush1.msra.mxu0 %v1140
    %1142 = vmatprep.subr.mxu0 0.0
    %v1143 = vand.u32 %v559, 4294901760
    %1144 = vmatpush1.msra.mxu0 %v1143
    %1145 = vmatprep.subr.mxu0 0.0
    %v1146 = vand.u32 %v560, 4294901760
    %1147 = vmatpush1.msra.mxu0 %v1146
    %1148 = vmatprep.subr.mxu0 0.0
    %v1149 = vand.u32 %v561, 4294901760
    %1150 = vmatpush1.msra.mxu0 %v1149
    %1151 = vmatprep.subr.mxu0 0.0
    %v1152 = vand.u32 %v562, 4294901760
    %1153 = vmatpush1.msra.mxu0 %v1152
    %1154 = vmatprep.subr.mxu0 0.0
    %v1155 = vand.u32 %v563, 4294901760
    %1156 = vmatpush1.msra.mxu0 %v1155
    %1157 = vmatprep.subr.mxu0 0.0
    %v1158 = vand.u32 %v564, 4294901760
    %1159 = vmatpush1.msra.mxu0 %v1158
    %1160 = vmatprep.subr.mxu0 0.0
    %v1161 = vand.u32 %v565, 4294901760
    %1162 = vmatpush1.msra.mxu0 %v1161
    %1163 = vmatprep.subr.mxu0 0.0
    %v1164 = vand.u32 %v566, 4294901760
    %1165 = vmatpush1.msra.mxu0 %v1164
    %1166 = vmatprep.subr.mxu0 0.0
    %v1167 = vand.u32 %v567, 4294901760
    %1168 = vmatpush1.msra.mxu0 %v1167
    %1169 = vmatprep.subr.mxu0 0.0
    %v1170 = vand.u32 %v568, 4294901760
    %1171 = vmatpush1.msra.mxu0 %v1170
    %1172 = vmatprep.subr.mxu0 0.0
    %v1173 = vand.u32 %v569, 4294901760
    %1174 = vmatpush1.msra.mxu0 %v1173
    %1175 = vmatprep.subr.mxu0 0.0
    %v1176 = vand.u32 %v570, 4294901760
    %1177 = vmatpush1.msra.mxu0 %v1176
    %1178 = vmatprep.subr.mxu0 0.0
    %v1179 = vand.u32 %v571, 4294901760
    %1180 = vmatpush1.msra.mxu0 %v1179
    %1181 = vmatprep.subr.mxu0 0.0
    %1182 = vmatpush1.msra.mxu0 0.0
    %1183 = vmatprep.subr.mxu0 0.0
    %1184 = vmatpush1.msra.mxu0 0.0
    %1185 = vmatprep.subr.mxu0 0.0
    %1186 = vmatpush1.msra.mxu0 0.0
    %1187 = vmatprep.subr.mxu0 0.0
    %1188 = vmatpush1.msra.mxu0 0.0
    %1189 = vmatprep.subr.mxu0 0.0
    %1190 = vmatpush1.msra.mxu0 0.0
    %1191 = vmatprep.subr.mxu0 0.0
    %1192 = vmatpush1.msra.mxu0 0.0
    %1193 = vmatprep.subr.mxu0 0.0
    %1194 = vmatpush1.msra.mxu0 0.0
    %1195 = vmatprep.subr.mxu0 0.0
    %1196 = vmatpush1.msra.mxu0 0.0
    %1197 = vmatprep.subr.mxu0 0.0
    %1198 = vmatpush1.msra.mxu0 0.0
    %1199 = vmatprep.subr.mxu0 0.0
    %1200 = vmatpush1.msra.mxu0 0.0
    %1201 = vmatprep.subr.mxu0 0.0
    %1202 = vmatpush1.msra.mxu0 0.0
    %1203 = vmatprep.subr.mxu0 0.0
    %1204 = vmatpush1.msra.mxu0 0.0
    %1205 = vmatprep.subr.mxu0 0.0
    %1206 = vmatpush1.msra.mxu0 0.0
    %1207 = vmatprep.subr.mxu0 0.0
    %1208 = vmatpush1.msra.mxu0 0.0
    %1209 = vmatprep.subr.mxu0 0.0
    %1210 = vmatpush1.msra.mxu0 0.0
    %1211 = vmatprep.subr.mxu0 0.0
    %1212 = vmatpush1.msra.mxu0 0.0
    %1213 = vmatprep.mubr.f32.mxu0 0.0
    %v1214 = vand.u32 %v555, 4294901760
    %1215 = vmatmul.mubr.f32.gmra.mrb[0].mxu0 %v1214
    %v1216 = vpop.f32.mrb[0].mxu0
    %v1217 = vadd.f32 %v1130, %v1216
    %v1218 = vpop.f32.mrb[0].mxu0
    %1219 = vdwg.mxu0
    %v1220 = vmax.f32 %v1217, 0.0
    %v1221 = vld [vmem:[#allocation8] sm:$0xff]
    %v1222 = vld [vmem:[#allocation8 + $0x8] sm:$0xff]
    %v1223 = vld [vmem:[#allocation8 + $0x10] sm:$0xff]
    %v1224 = vld [vmem:[#allocation8 + $0x18] sm:$0xff]
    %v1225 = vld [vmem:[#allocation8 + $0x20] sm:$0xff]
    %v1226 = vld [vmem:[#allocation8 + $0x28] sm:$0xff]
    %v1227 = vld [vmem:[#allocation8 + $0x30] sm:$0xff]
    %v1228 = vld [vmem:[#allocation8 + $0x38] sm:$0xff]
    %v1229 = vld [vmem:[#allocation8 + $0x40] sm:$0xff]
    %v1230 = vld [vmem:[#allocation8 + $0x48] sm:$0xff]
    %v1231 = vld [vmem:[#allocation8 + $0x50] sm:$0xff]
    %v1232 = vld [vmem:[#allocation8 + $0x58] sm:$0xff]
    %v1233 = vld [vmem:[#allocation8 + $0x60] sm:$0xff]
    %v1234 = vld [vmem:[#allocation8 + $0x68] sm:$0xff]
    %v1235 = vld [vmem:[#allocation8 + $0x70] sm:$0xff]
    %v1236 = vld [vmem:[#allocation8 + $0x78] sm:$0xff]
    %v1237 = vld [vmem:[%s6] sm:$0x1]
    %v1239 = vlaneseq
    %v1240 = vshrl.u32 %v1239, 7
    %v1241 = vsub.s32 0, %v1240
    %v1242 = vrot.slane %v1237, %v1241
    %1244 = vmatprep.subr.mxu0 0.0
    %v1245 = vand.u32 %v1221, 4294901760
    %1246 = vmatpush1.msra.mxu0 %v1245
    %1247 = vmatprep.subr.mxu0 0.0
    %v1248 = vand.u32 %v1222, 4294901760
    %1249 = vmatpush1.msra.mxu0 %v1248
    %1250 = vmatprep.subr.mxu0 0.0
    %v1251 = vand.u32 %v1223, 4294901760
    %1252 = vmatpush1.msra.mxu0 %v1251
    %1253 = vmatprep.subr.mxu0 0.0
    %v1254 = vand.u32 %v1224, 4294901760
    %1255 = vmatpush1.msra.mxu0 %v1254
    %1256 = vmatprep.subr.mxu0 0.0
    %v1257 = vand.u32 %v1225, 4294901760
    %1258 = vmatpush1.msra.mxu0 %v1257
    %1259 = vmatprep.subr.mxu0 0.0
    %v1260 = vand.u32 %v1226, 4294901760
    %1261 = vmatpush1.msra.mxu0 %v1260
    %1262 = vmatprep.subr.mxu0 0.0
    %v1263 = vand.u32 %v1227, 4294901760
    %1264 = vmatpush1.msra.mxu0 %v1263
    %1265 = vmatprep.subr.mxu0 0.0
    %v1266 = vand.u32 %v1228, 4294901760
    %1267 = vmatpush1.msra.mxu0 %v1266
    %1268 = vmatprep.subr.mxu0 0.0
    %v1269 = vand.u32 %v1229, 4294901760
    %1270 = vmatpush1.msra.mxu0 %v1269
    %1271 = vmatprep.subr.mxu0 0.0
    %v1272 = vand.u32 %v1230, 4294901760
    %1273 = vmatpush1.msra.mxu0 %v1272
    %1274 = vmatprep.subr.mxu0 0.0
    %v1275 = vand.u32 %v1231, 4294901760
    %1276 = vmatpush1.msra.mxu0 %v1275
    %1277 = vmatprep.subr.mxu0 0.0
    %v1278 = vand.u32 %v1232, 4294901760
    %1279 = vmatpush1.msra.mxu0 %v1278
    %1280 = vmatprep.subr.mxu0 0.0
    %v1281 = vand.u32 %v1233, 4294901760
    %1282 = vmatpush1.msra.mxu0 %v1281
    %1283 = vmatprep.subr.mxu0 0.0
    %v1284 = vand.u32 %v1234, 4294901760
    %1285 = vmatpush1.msra.mxu0 %v1284
    %1286 = vmatprep.subr.mxu0 0.0
    %v1287 = vand.u32 %v1235, 4294901760
    %1288 = vmatpush1.msra.mxu0 %v1287
    %1289 = vmatprep.subr.mxu0 0.0
    %v1290 = vand.u32 %v1236, 4294901760
    %1291 = vmatpush1.msra.mxu0 %v1290
    %1292 = vmatprep.subr.mxu0 0.0
    %1293 = vmatpush1.msra.mxu0 0.0
    %1294 = vmatprep.subr.mxu0 0.0
    %1295 = vmatpush1.msra.mxu0 0.0
    %1296 = vmatprep.subr.mxu0 0.0
    %1297 = vmatpush1.msra.mxu0 0.0
    %1298 = vmatprep.subr.mxu0 0.0
    %1299 = vmatpush1.msra.mxu0 0.0
    %1300 = vmatprep.subr.mxu0 0.0
    %1301 = vmatpush1.msra.mxu0 0.0
    %1302 = vmatprep.subr.mxu0 0.0
    %1303 = vmatpush1.msra.mxu0 0.0
    %1304 = vmatprep.subr.mxu0 0.0
    %1305 = vmatpush1.msra.mxu0 0.0
    %1306 = vmatprep.subr.mxu0 0.0
    %1307 = vmatpush1.msra.mxu0 0.0
    %1308 = vmatprep.subr.mxu0 0.0
    %1309 = vmatpush1.msra.mxu0 0.0
    %1310 = vmatprep.subr.mxu0 0.0
    %1311 = vmatpush1.msra.mxu0 0.0
    %1312 = vmatprep.subr.mxu0 0.0
    %1313 = vmatpush1.msra.mxu0 0.0
    %1314 = vmatprep.subr.mxu0 0.0
    %1315 = vmatpush1.msra.mxu0 0.0
    %1316 = vmatprep.subr.mxu0 0.0
    %1317 = vmatpush1.msra.mxu0 0.0
    %1318 = vmatprep.subr.mxu0 0.0
    %1319 = vmatpush1.msra.mxu0 0.0
    %1320 = vmatprep.subr.mxu0 0.0
    %1321 = vmatpush1.msra.mxu0 0.0
    %1322 = vmatprep.subr.mxu0 0.0
    %1323 = vmatpush1.msra.mxu0 0.0
    %1324 = vmatprep.mubr.f32.mxu0 0.0
    %v1325 = vand.u32 %v1220, 4294901760
    %v1326 = vsub.f32 %v1220, %v1325
    %v1327 = vand.u32 %v1326, 4294901760
    %v1328 = vsub.f32 %v1326, %v1327
    %v1329 = vand.u32 %v1328, 4294901760
    %1330 = vmatmul.mubr.f32.gmra.mrb[0].mxu0 %v1329
    %v1331 = vpop.f32.mrb[0].mxu0
    %v1332 = vadd.f32 %v1242, %v1331
    %v1333 = vpop.f32.mrb[0].mxu0
    %1334 = vdwg.mxu0
    %1335 = vmatprep.subr.mxu0 0.0
    %v1336 = vand.u32 %v1221, 4294901760
    %v1337 = vsub.f32 %v1221, %v1336
    %v1338 = vand.u32 %v1337, 4294901760
    %v1339 = vsub.f32 %v1337, %v1338
    %v1340 = vand.u32 %v1339, 4294901760
    %1341 = vmatpush1.msra.mxu0 %v1340
    %1342 = vmatprep.subr.mxu0 0.0
    %v1343 = vand.u32 %v1222, 4294901760
    %v1344 = vsub.f32 %v1222, %v1343
    %v1345 = vand.u32 %v1344, 4294901760
    %v1346 = vsub.f32 %v1344, %v1345
    %v1347 = vand.u32 %v1346, 4294901760
    %1348 = vmatpush1.msra.mxu0 %v1347
    %1349 = vmatprep.subr.mxu0 0.0
    %v1350 = vand.u32 %v1223, 4294901760
    %v1351 = vsub.f32 %v1223, %v1350
    %v1352 = vand.u32 %v1351, 4294901760
    %v1353 = vsub.f32 %v1351, %v1352
    %v1354 = vand.u32 %v1353, 4294901760
    %1355 = vmatpush1.msra.mxu0 %v1354
    %1356 = vmatprep.subr.mxu0 0.0
    %v1357 = vand.u32 %v1224, 4294901760
    %v1358 = vsub.f32 %v1224, %v1357
    %v1359 = vand.u32 %v1358, 4294901760
    %v1360 = vsub.f32 %v1358, %v1359
    %v1361 = vand.u32 %v1360, 4294901760
    %1362 = vmatpush1.msra.mxu0 %v1361
    %1363 = vmatprep.subr.mxu0 0.0
    %v1364 = vand.u32 %v1225, 4294901760
    %v1365 = vsub.f32 %v1225, %v1364
    %v1366 = vand.u32 %v1365, 4294901760
    %v1367 = vsub.f32 %v1365, %v1366
    %v1368 = vand.u32 %v1367, 4294901760
    %1369 = vmatpush1.msra.mxu0 %v1368
    %1370 = vmatprep.subr.mxu0 0.0
    %v1371 = vand.u32 %v1226, 4294901760
    %v1372 = vsub.f32 %v1226, %v1371
    %v1373 = vand.u32 %v1372, 4294901760
    %v1374 = vsub.f32 %v1372, %v1373
    %v1375 = vand.u32 %v1374, 4294901760
    %1376 = vmatpush1.msra.mxu0 %v1375
    %1377 = vmatprep.subr.mxu0 0.0
    %v1378 = vand.u32 %v1227, 4294901760
    %v1379 = vsub.f32 %v1227, %v1378
    %v1380 = vand.u32 %v1379, 4294901760
    %v1381 = vsub.f32 %v1379, %v1380
    %v1382 = vand.u32 %v1381, 4294901760
    %1383 = vmatpush1.msra.mxu0 %v1382
    %1384 = vmatprep.subr.mxu0 0.0
    %v1385 = vand.u32 %v1228, 4294901760
    %v1386 = vsub.f32 %v1228, %v1385
    %v1387 = vand.u32 %v1386, 4294901760
    %v1388 = vsub.f32 %v1386, %v1387
    %v1389 = vand.u32 %v1388, 4294901760
    %1390 = vmatpush1.msra.mxu0 %v1389
    %1391 = vmatprep.subr.mxu0 0.0
    %v1392 = vand.u32 %v1229, 4294901760
    %v1393 = vsub.f32 %v1229, %v1392
    %v1394 = vand.u32 %v1393, 4294901760
    %v1395 = vsub.f32 %v1393, %v1394
    %v1396 = vand.u32 %v1395, 4294901760
    %1397 = vmatpush1.msra.mxu0 %v1396
    %1398 = vmatprep.subr.mxu0 0.0
    %v1399 = vand.u32 %v1230, 4294901760
    %v1400 = vsub.f32 %v1230, %v1399
    %v1401 = vand.u32 %v1400, 4294901760
    %v1402 = vsub.f32 %v1400, %v1401
    %v1403 = vand.u32 %v1402, 4294901760
    %1404 = vmatpush1.msra.mxu0 %v1403
    %1405 = vmatprep.subr.mxu0 0.0
    %v1406 = vand.u32 %v1231, 4294901760
    %v1407 = vsub.f32 %v1231, %v1406
    %v1408 = vand.u32 %v1407, 4294901760
    %v1409 = vsub.f32 %v1407, %v1408
    %v1410 = vand.u32 %v1409, 4294901760
    %1411 = vmatpush1.msra.mxu0 %v1410
    %1412 = vmatprep.subr.mxu0 0.0
    %v1413 = vand.u32 %v1232, 4294901760
    %v1414 = vsub.f32 %v1232, %v1413
    %v1415 = vand.u32 %v1414, 4294901760
    %v1416 = vsub.f32 %v1414, %v1415
    %v1417 = vand.u32 %v1416, 4294901760
    %1418 = vmatpush1.msra.mxu0 %v1417
    %1419 = vmatprep.subr.mxu0 0.0
    %v1420 = vand.u32 %v1233, 4294901760
    %v1421 = vsub.f32 %v1233, %v1420
    %v1422 = vand.u32 %v1421, 4294901760
    %v1423 = vsub.f32 %v1421, %v1422
    %v1424 = vand.u32 %v1423, 4294901760
    %1425 = vmatpush1.msra.mxu0 %v1424
    %1426 = vmatprep.subr.mxu0 0.0
    %v1427 = vand.u32 %v1234, 4294901760
    %v1428 = vsub.f32 %v1234, %v1427
    %v1429 = vand.u32 %v1428, 4294901760
    %v1430 = vsub.f32 %v1428, %v1429
    %v1431 = vand.u32 %v1430, 4294901760
    %1432 = vmatpush1.msra.mxu0 %v1431
    %1433 = vmatprep.subr.mxu0 0.0
    %v1434 = vand.u32 %v1235, 4294901760
    %v1435 = vsub.f32 %v1235, %v1434
    %v1436 = vand.u32 %v1435, 4294901760
    %v1437 = vsub.f32 %v1435, %v1436
    %v1438 = vand.u32 %v1437, 4294901760
    %1439 = vmatpush1.msra.mxu0 %v1438
    %1440 = vmatprep.subr.mxu0 0.0
    %v1441 = vand.u32 %v1236, 4294901760
    %v1442 = vsub.f32 %v1236, %v1441
    %v1443 = vand.u32 %v1442, 4294901760
    %v1444 = vsub.f32 %v1442, %v1443
    %v1445 = vand.u32 %v1444, 4294901760
    %1446 = vmatpush1.msra.mxu0 %v1445
    %1447 = vmatprep.subr.mxu0 0.0
    %1448 = vmatpush1.msra.mxu0 0.0
    %1449 = vmatprep.subr.mxu0 0.0
    %1450 = vmatpush1.msra.mxu0 0.0
    %1451 = vmatprep.subr.mxu0 0.0
    %1452 = vmatpush1.msra.mxu0 0.0
    %1453 = vmatprep.subr.mxu0 0.0
    %1454 = vmatpush1.msra.mxu0 0.0
    %1455 = vmatprep.subr.mxu0 0.0
    %1456 = vmatpush1.msra.mxu0 0.0
    %1457 = vmatprep.subr.mxu0 0.0
    %1458 = vmatpush1.msra.mxu0 0.0
    %1459 = vmatprep.subr.mxu0 0.0
    %1460 = vmatpush1.msra.mxu0 0.0
    %1461 = vmatprep.subr.mxu0 0.0
    %1462 = vmatpush1.msra.mxu0 0.0
    %1463 = vmatprep.subr.mxu0 0.0
    %1464 = vmatpush1.msra.mxu0 0.0
    %1465 = vmatprep.subr.mxu0 0.0
    %1466 = vmatpush1.msra.mxu0 0.0
    %1467 = vmatprep.subr.mxu0 0.0
    %1468 = vmatpush1.msra.mxu0 0.0
    %1469 = vmatprep.subr.mxu0 0.0
    %1470 = vmatpush1.msra.mxu0 0.0
    %1471 = vmatprep.subr.mxu0 0.0
    %1472 = vmatpush1.msra.mxu0 0.0
    %1473 = vmatprep.subr.mxu0 0.0
    %1474 = vmatpush1.msra.mxu0 0.0
    %1475 = vmatprep.subr.mxu0 0.0
    %1476 = vmatpush1.msra.mxu0 0.0
    %1477 = vmatprep.subr.mxu0 0.0
    %1478 = vmatpush1.msra.mxu0 0.0
    %1479 = vmatprep.mubr.f32.mxu0 0.0
    %v1480 = vand.u32 %v1220, 4294901760
    %1481 = vmatmul.mubr.f32.gmra.mrb[0].mxu0 %v1480
    %v1482 = vpop.f32.mrb[0].mxu0
    %v1483 = vadd.f32 %v1332, %v1482
    %v1484 = vpop.f32.mrb[0].mxu0
    %1485 = vdwg.mxu0
    %1486 = vmatprep.subr.mxu0 0.0
    %v1487 = vand.u32 %v1221, 4294901760
    %v1488 = vsub.f32 %v1221, %v1487
    %1489 = vmatpush1.msra.mxu0 %v1488
    %1490 = vmatprep.subr.mxu0 0.0
    %v1491 = vand.u32 %v1222, 4294901760
    %v1492 = vsub.f32 %v1222, %v1491
    %1493 = vmatpush1.msra.mxu0 %v1492
    %1494 = vmatprep.subr.mxu0 0.0
    %v1495 = vand.u32 %v1223, 4294901760
    %v1496 = vsub.f32 %v1223, %v1495
    %1497 = vmatpush1.msra.mxu0 %v1496
    %1498 = vmatprep.subr.mxu0 0.0
    %v1499 = vand.u32 %v1224, 4294901760
    %v1500 = vsub.f32 %v1224, %v1499
    %1501 = vmatpush1.msra.mxu0 %v1500
    %1502 = vmatprep.subr.mxu0 0.0
    %v1503 = vand.u32 %v1225, 4294901760
    %v1504 = vsub.f32 %v1225, %v1503
    %1505 = vmatpush1.msra.mxu0 %v1504
    %1506 = vmatprep.subr.mxu0 0.0
    %v1507 = vand.u32 %v1226, 4294901760
    %v1508 = vsub.f32 %v1226, %v1507
    %1509 = vmatpush1.msra.mxu0 %v1508
    %1510 = vmatprep.subr.mxu0 0.0
    %v1511 = vand.u32 %v1227, 4294901760
    %v1512 = vsub.f32 %v1227, %v1511
    %1513 = vmatpush1.msra.mxu0 %v1512
    %1514 = vmatprep.subr.mxu0 0.0
    %v1515 = vand.u32 %v1228, 4294901760
    %v1516 = vsub.f32 %v1228, %v1515
    %1517 = vmatpush1.msra.mxu0 %v1516
    %1518 = vmatprep.subr.mxu0 0.0
    %v1519 = vand.u32 %v1229, 4294901760
    %v1520 = vsub.f32 %v1229, %v1519
    %1521 = vmatpush1.msra.mxu0 %v1520
    %1522 = vmatprep.subr.mxu0 0.0
    %v1523 = vand.u32 %v1230, 4294901760
    %v1524 = vsub.f32 %v1230, %v1523
    %1525 = vmatpush1.msra.mxu0 %v1524
    %1526 = vmatprep.subr.mxu0 0.0
    %v1527 = vand.u32 %v1231, 4294901760
    %v1528 = vsub.f32 %v1231, %v1527
    %1529 = vmatpush1.msra.mxu0 %v1528
    %1530 = vmatprep.subr.mxu0 0.0
    %v1531 = vand.u32 %v1232, 4294901760
    %v1532 = vsub.f32 %v1232, %v1531
    %1533 = vmatpush1.msra.mxu0 %v1532
    %1534 = vmatprep.subr.mxu0 0.0
    %v1535 = vand.u32 %v1233, 4294901760
    %v1536 = vsub.f32 %v1233, %v1535
    %1537 = vmatpush1.msra.mxu0 %v1536
    %1538 = vmatprep.subr.mxu0 0.0
    %v1539 = vand.u32 %v1234, 4294901760
    %v1540 = vsub.f32 %v1234, %v1539
    %1541 = vmatpush1.msra.mxu0 %v1540
    %1542 = vmatprep.subr.mxu0 0.0
    %v1543 = vand.u32 %v1235, 4294901760
    %v1544 = vsub.f32 %v1235, %v1543
    %1545 = vmatpush1.msra.mxu0 %v1544
    %1546 = vmatprep.subr.mxu0 0.0
    %v1547 = vand.u32 %v1236, 4294901760
    %v1548 = vsub.f32 %v1236, %v1547
    %1549 = vmatpush1.msra.mxu0 %v1548
    %1550 = vmatprep.subr.mxu0 0.0
    %1551 = vmatpush1.msra.mxu0 0.0
    %1552 = vmatprep.subr.mxu0 0.0
    %1553 = vmatpush1.msra.mxu0 0.0
    %1554 = vmatprep.subr.mxu0 0.0
    %1555 = vmatpush1.msra.mxu0 0.0
    %1556 = vmatprep.subr.mxu0 0.0
    %1557 = vmatpush1.msra.mxu0 0.0
    %1558 = vmatprep.subr.mxu0 0.0
    %1559 = vmatpush1.msra.mxu0 0.0
    %1560 = vmatprep.subr.mxu0 0.0
    %1561 = vmatpush1.msra.mxu0 0.0
    %1562 = vmatprep.subr.mxu0 0.0
    %1563 = vmatpush1.msra.mxu0 0.0
    %1564 = vmatprep.subr.mxu0 0.0
    %1565 = vmatpush1.msra.mxu0 0.0
    %1566 = vmatprep.subr.mxu0 0.0
    %1567 = vmatpush1.msra.mxu0 0.0
    %1568 = vmatprep.subr.mxu0 0.0
    %1569 = vmatpush1.msra.mxu0 0.0
    %1570 = vmatprep.subr.mxu0 0.0
    %1571 = vmatpush1.msra.mxu0 0.0
    %1572 = vmatprep.subr.mxu0 0.0
    %1573 = vmatpush1.msra.mxu0 0.0
    %1574 = vmatprep.subr.mxu0 0.0
    %1575 = vmatpush1.msra.mxu0 0.0
    %1576 = vmatprep.subr.mxu0 0.0
    %1577 = vmatpush1.msra.mxu0 0.0
    %1578 = vmatprep.subr.mxu0 0.0
    %1579 = vmatpush1.msra.mxu0 0.0
    %1580 = vmatprep.subr.mxu0 0.0
    %1581 = vmatpush1.msra.mxu0 0.0
    %1582 = vmatprep.mubr.f32.mxu0 0.0
    %v1583 = vand.u32 %v1220, 4294901760
    %v1584 = vsub.f32 %v1220, %v1583
    %1585 = vmatmul.mubr.f32.gmra.mrb[0].mxu0 %v1584
    %v1586 = vpop.f32.mrb[0].mxu0
    %v1587 = vadd.f32 %v1483, %v1586
    %v1588 = vpop.f32.mrb[0].mxu0
    %1589 = vdwg.mxu0
    %1590 = vmatprep.subr.mxu0 0.0
    %v1591 = vand.u32 %v1221, 4294901760
    %1592 = vmatpush1.msra.mxu0 %v1591
    %1593 = vmatprep.subr.mxu0 0.0
    %v1594 = vand.u32 %v1222, 4294901760
    %1595 = vmatpush1.msra.mxu0 %v1594
    %1596 = vmatprep.subr.mxu0 0.0
    %v1597 = vand.u32 %v1223, 4294901760
    %1598 = vmatpush1.msra.mxu0 %v1597
    %1599 = vmatprep.subr.mxu0 0.0
    %v1600 = vand.u32 %v1224, 4294901760
    %1601 = vmatpush1.msra.mxu0 %v1600
    %1602 = vmatprep.subr.mxu0 0.0
    %v1603 = vand.u32 %v1225, 4294901760
    %1604 = vmatpush1.msra.mxu0 %v1603
    %1605 = vmatprep.subr.mxu0 0.0
    %v1606 = vand.u32 %v1226, 4294901760
    %1607 = vmatpush1.msra.mxu0 %v1606
    %1608 = vmatprep.subr.mxu0 0.0
    %v1609 = vand.u32 %v1227, 4294901760
    %1610 = vmatpush1.msra.mxu0 %v1609
    %1611 = vmatprep.subr.mxu0 0.0
    %v1612 = vand.u32 %v1228, 4294901760
    %1613 = vmatpush1.msra.mxu0 %v1612
    %1614 = vmatprep.subr.mxu0 0.0
    %v1615 = vand.u32 %v1229, 4294901760
    %1616 = vmatpush1.msra.mxu0 %v1615
    %1617 = vmatprep.subr.mxu0 0.0
    %v1618 = vand.u32 %v1230, 4294901760
    %1619 = vmatpush1.msra.mxu0 %v1618
    %1620 = vmatprep.subr.mxu0 0.0
    %v1621 = vand.u32 %v1231, 4294901760
    %1622 = vmatpush1.msra.mxu0 %v1621
    %1623 = vmatprep.subr.mxu0 0.0
    %v1624 = vand.u32 %v1232, 4294901760
    %1625 = vmatpush1.msra.mxu0 %v1624
    %1626 = vmatprep.subr.mxu0 0.0
    %v1627 = vand.u32 %v1233, 4294901760
    %1628 = vmatpush1.msra.mxu0 %v1627
    %1629 = vmatprep.subr.mxu0 0.0
    %v1630 = vand.u32 %v1234, 4294901760
    %1631 = vmatpush1.msra.mxu0 %v1630
    %1632 = vmatprep.subr.mxu0 0.0
    %v1633 = vand.u32 %v1235, 4294901760
    %1634 = vmatpush1.msra.mxu0 %v1633
    %1635 = vmatprep.subr.mxu0 0.0
    %v1636 = vand.u32 %v1236, 4294901760
    %1637 = vmatpush1.msra.mxu0 %v1636
    %1638 = vmatprep.subr.mxu0 0.0
    %1639 = vmatpush1.msra.mxu0 0.0
    %1640 = vmatprep.subr.mxu0 0.0
    %1641 = vmatpush1.msra.mxu0 0.0
    %1642 = vmatprep.subr.mxu0 0.0
    %1643 = vmatpush1.msra.mxu0 0.0
    %1644 = vmatprep.subr.mxu0 0.0
    %1645 = vmatpush1.msra.mxu0 0.0
    %1646 = vmatprep.subr.mxu0 0.0
    %1647 = vmatpush1.msra.mxu0 0.0
    %1648 = vmatprep.subr.mxu0 0.0
    %1649 = vmatpush1.msra.mxu0 0.0
    %1650 = vmatprep.subr.mxu0 0.0
    %1651 = vmatpush1.msra.mxu0 0.0
    %1652 = vmatprep.subr.mxu0 0.0
    %1653 = vmatpush1.msra.mxu0 0.0
    %1654 = vmatprep.subr.mxu0 0.0
    %1655 = vmatpush1.msra.mxu0 0.0
    %1656 = vmatprep.subr.mxu0 0.0
    %1657 = vmatpush1.msra.mxu0 0.0
    %1658 = vmatprep.subr.mxu0 0.0
    %1659 = vmatpush1.msra.mxu0 0.0
    %1660 = vmatprep.subr.mxu0 0.0
    %1661 = vmatpush1.msra.mxu0 0.0
    %1662 = vmatprep.subr.mxu0 0.0
    %1663 = vmatpush1.msra.mxu0 0.0
    %1664 = vmatprep.subr.mxu0 0.0
    %1665 = vmatpush1.msra.mxu0 0.0
    %1666 = vmatprep.subr.mxu0 0.0
    %1667 = vmatpush1.msra.mxu0 0.0
    %1668 = vmatprep.subr.mxu0 0.0
    %1669 = vmatpush1.msra.mxu0 0.0
    %1670 = vmatprep.mubr.f32.mxu0 0.0
    %v1671 = vand.u32 %v1220, 4294901760
    %v1672 = vsub.f32 %v1220, %v1671
    %v1673 = vand.u32 %v1672, 4294901760
    %1674 = vmatmul.mubr.f32.gmra.mrb[0].mxu0 %v1673
    %v1675 = vpop.f32.mrb[0].mxu0
    %v1676 = vadd.f32 %v1587, %v1675
    %v1677 = vpop.f32.mrb[0].mxu0
    %1678 = vdwg.mxu0
    %1679 = vmatprep.subr.mxu0 0.0
    %v1680 = vand.u32 %v1221, 4294901760
    %v1681 = vsub.f32 %v1221, %v1680
    %v1682 = vand.u32 %v1681, 4294901760
    %1683 = vmatpush1.msra.mxu0 %v1682
    %1684 = vmatprep.subr.mxu0 0.0
    %v1685 = vand.u32 %v1222, 4294901760
    %v1686 = vsub.f32 %v1222, %v1685
    %v1687 = vand.u32 %v1686, 4294901760
    %1688 = vmatpush1.msra.mxu0 %v1687
    %1689 = vmatprep.subr.mxu0 0.0
    %v1690 = vand.u32 %v1223, 4294901760
    %v1691 = vsub.f32 %v1223, %v1690
    %v1692 = vand.u32 %v1691, 4294901760
    %1693 = vmatpush1.msra.mxu0 %v1692
    %1694 = vmatprep.subr.mxu0 0.0
    %v1695 = vand.u32 %v1224, 4294901760
    %v1696 = vsub.f32 %v1224, %v1695
    %v1697 = vand.u32 %v1696, 4294901760
    %1698 = vmatpush1.msra.mxu0 %v1697
    %1699 = vmatprep.subr.mxu0 0.0
    %v1700 = vand.u32 %v1225, 4294901760
    %v1701 = vsub.f32 %v1225, %v1700
    %v1702 = vand.u32 %v1701, 4294901760
    %1703 = vmatpush1.msra.mxu0 %v1702
    %1704 = vmatprep.subr.mxu0 0.0
    %v1705 = vand.u32 %v1226, 4294901760
    %v1706 = vsub.f32 %v1226, %v1705
    %v1707 = vand.u32 %v1706, 4294901760
    %1708 = vmatpush1.msra.mxu0 %v1707
    %1709 = vmatprep.subr.mxu0 0.0
    %v1710 = vand.u32 %v1227, 4294901760
    %v1711 = vsub.f32 %v1227, %v1710
    %v1712 = vand.u32 %v1711, 4294901760
    %1713 = vmatpush1.msra.mxu0 %v1712
    %1714 = vmatprep.subr.mxu0 0.0
    %v1715 = vand.u32 %v1228, 4294901760
    %v1716 = vsub.f32 %v1228, %v1715
    %v1717 = vand.u32 %v1716, 4294901760
    %1718 = vmatpush1.msra.mxu0 %v1717
    %1719 = vmatprep.subr.mxu0 0.0
    %v1720 = vand.u32 %v1229, 4294901760
    %v1721 = vsub.f32 %v1229, %v1720
    %v1722 = vand.u32 %v1721, 4294901760
    %1723 = vmatpush1.msra.mxu0 %v1722
    %1724 = vmatprep.subr.mxu0 0.0
    %v1725 = vand.u32 %v1230, 4294901760
    %v1726 = vsub.f32 %v1230, %v1725
    %v1727 = vand.u32 %v1726, 4294901760
    %1728 = vmatpush1.msra.mxu0 %v1727
    %1729 = vmatprep.subr.mxu0 0.0
    %v1730 = vand.u32 %v1231, 4294901760
    %v1731 = vsub.f32 %v1231, %v1730
    %v1732 = vand.u32 %v1731, 4294901760
    %1733 = vmatpush1.msra.mxu0 %v1732
    %1734 = vmatprep.subr.mxu0 0.0
    %v1735 = vand.u32 %v1232, 4294901760
    %v1736 = vsub.f32 %v1232, %v1735
    %v1737 = vand.u32 %v1736, 4294901760
    %1738 = vmatpush1.msra.mxu0 %v1737
    %1739 = vmatprep.subr.mxu0 0.0
    %v1740 = vand.u32 %v1233, 4294901760
    %v1741 = vsub.f32 %v1233, %v1740
    %v1742 = vand.u32 %v1741, 4294901760
    %1743 = vmatpush1.msra.mxu0 %v1742
    %1744 = vmatprep.subr.mxu0 0.0
    %v1745 = vand.u32 %v1234, 4294901760
    %v1746 = vsub.f32 %v1234, %v1745
    %v1747 = vand.u32 %v1746, 4294901760
    %1748 = vmatpush1.msra.mxu0 %v1747
    %1749 = vmatprep.subr.mxu0 0.0
    %v1750 = vand.u32 %v1235, 4294901760
    %v1751 = vsub.f32 %v1235, %v1750
    %v1752 = vand.u32 %v1751, 4294901760
    %1753 = vmatpush1.msra.mxu0 %v1752
    %1754 = vmatprep.subr.mxu0 0.0
    %v1755 = vand.u32 %v1236, 4294901760
    %v1756 = vsub.f32 %v1236, %v1755
    %v1757 = vand.u32 %v1756, 4294901760
    %1758 = vmatpush1.msra.mxu0 %v1757
    %1759 = vmatprep.subr.mxu0 0.0
    %1760 = vmatpush1.msra.mxu0 0.0
    %1761 = vmatprep.subr.mxu0 0.0
    %1762 = vmatpush1.msra.mxu0 0.0
    %1763 = vmatprep.subr.mxu0 0.0
    %1764 = vmatpush1.msra.mxu0 0.0
    %1765 = vmatprep.subr.mxu0 0.0
    %1766 = vmatpush1.msra.mxu0 0.0
    %1767 = vmatprep.subr.mxu0 0.0
    %1768 = vmatpush1.msra.mxu0 0.0
    %1769 = vmatprep.subr.mxu0 0.0
    %1770 = vmatpush1.msra.mxu0 0.0
    %1771 = vmatprep.subr.mxu0 0.0
    %1772 = vmatpush1.msra.mxu0 0.0
    %1773 = vmatprep.subr.mxu0 0.0
    %1774 = vmatpush1.msra.mxu0 0.0
    %1775 = vmatprep.subr.mxu0 0.0
    %1776 = vmatpush1.msra.mxu0 0.0
    %1777 = vmatprep.subr.mxu0 0.0
    %1778 = vmatpush1.msra.mxu0 0.0
    %1779 = vmatprep.subr.mxu0 0.0
    %1780 = vmatpush1.msra.mxu0 0.0
    %1781 = vmatprep.subr.mxu0 0.0
    %1782 = vmatpush1.msra.mxu0 0.0
    %1783 = vmatprep.subr.mxu0 0.0
    %1784 = vmatpush1.msra.mxu0 0.0
    %1785 = vmatprep.subr.mxu0 0.0
    %1786 = vmatpush1.msra.mxu0 0.0
    %1787 = vmatprep.subr.mxu0 0.0
    %1788 = vmatpush1.msra.mxu0 0.0
    %1789 = vmatprep.subr.mxu0 0.0
    %1790 = vmatpush1.msra.mxu0 0.0
    %1791 = vmatprep.mubr.f32.mxu0 0.0
    %v1792 = vand.u32 %v1220, 4294901760
    %1793 = vmatmul.mubr.f32.gmra.mrb[0].mxu0 %v1792
    %v1794 = vpop.f32.mrb[0].mxu0
    %v1795 = vadd.f32 %v1676, %v1794
    %v1796 = vpop.f32.mrb[0].mxu0
    %1797 = vdwg.mxu0
    %1798 = vmatprep.subr.mxu0 0.0
    %v1799 = vand.u32 %v1221, 4294901760
    %1800 = vmatpush1.msra.mxu0 %v1799
    %1801 = vmatprep.subr.mxu0 0.0
    %v1802 = vand.u32 %v1222, 4294901760
    %1803 = vmatpush1.msra.mxu0 %v1802
    %1804 = vmatprep.subr.mxu0 0.0
    %v1805 = vand.u32 %v1223, 4294901760
    %1806 = vmatpush1.msra.mxu0 %v1805
    %1807 = vmatprep.subr.mxu0 0.0
    %v1808 = vand.u32 %v1224, 4294901760
    %1809 = vmatpush1.msra.mxu0 %v1808
    %1810 = vmatprep.subr.mxu0 0.0
    %v1811 = vand.u32 %v1225, 4294901760
    %1812 = vmatpush1.msra.mxu0 %v1811
    %1813 = vmatprep.subr.mxu0 0.0
    %v1814 = vand.u32 %v1226, 4294901760
    %1815 = vmatpush1.msra.mxu0 %v1814
    %1816 = vmatprep.subr.mxu0 0.0
    %v1817 = vand.u32 %v1227, 4294901760
    %1818 = vmatpush1.msra.mxu0 %v1817
    %1819 = vmatprep.subr.mxu0 0.0
    %v1820 = vand.u32 %v1228, 4294901760
    %1821 = vmatpush1.msra.mxu0 %v1820
    %1822 = vmatprep.subr.mxu0 0.0
    %v1823 = vand.u32 %v1229, 4294901760
    %1824 = vmatpush1.msra.mxu0 %v1823
    %1825 = vmatprep.subr.mxu0 0.0
    %v1826 = vand.u32 %v1230, 4294901760
    %1827 = vmatpush1.msra.mxu0 %v1826
    %1828 = vmatprep.subr.mxu0 0.0
    %v1829 = vand.u32 %v1231, 4294901760
    %1830 = vmatpush1.msra.mxu0 %v1829
    %1831 = vmatprep.subr.mxu0 0.0
    %v1832 = vand.u32 %v1232, 4294901760
    %1833 = vmatpush1.msra.mxu0 %v1832
    %1834 = vmatprep.subr.mxu0 0.0
    %v1835 = vand.u32 %v1233, 4294901760
    %1836 = vmatpush1.msra.mxu0 %v1835
    %1837 = vmatprep.subr.mxu0 0.0
    %v1838 = vand.u32 %v1234, 4294901760
    %1839 = vmatpush1.msra.mxu0 %v1838
    %1840 = vmatprep.subr.mxu0 0.0
    %v1841 = vand.u32 %v1235, 4294901760
    %1842 = vmatpush1.msra.mxu0 %v1841
    %1843 = vmatprep.subr.mxu0 0.0
    %v1844 = vand.u32 %v1236, 4294901760
    %1845 = vmatpush1.msra.mxu0 %v1844
    %1846 = vmatprep.subr.mxu0 0.0
    %1847 = vmatpush1.msra.mxu0 0.0
    %1848 = vmatprep.subr.mxu0 0.0
    %1849 = vmatpush1.msra.mxu0 0.0
    %1850 = vmatprep.subr.mxu0 0.0
    %1851 = vmatpush1.msra.mxu0 0.0
    %1852 = vmatprep.subr.mxu0 0.0
    %1853 = vmatpush1.msra.mxu0 0.0
    %1854 = vmatprep.subr.mxu0 0.0
    %1855 = vmatpush1.msra.mxu0 0.0
    %1856 = vmatprep.subr.mxu0 0.0
    %1857 = vmatpush1.msra.mxu0 0.0
    %1858 = vmatprep.subr.mxu0 0.0
    %1859 = vmatpush1.msra.mxu0 0.0
    %1860 = vmatprep.subr.mxu0 0.0
    %1861 = vmatpush1.msra.mxu0 0.0
    %1862 = vmatprep.subr.mxu0 0.0
    %1863 = vmatpush1.msra.mxu0 0.0
    %1864 = vmatprep.subr.mxu0 0.0
    %1865 = vmatpush1.msra.mxu0 0.0
    %1866 = vmatprep.subr.mxu0 0.0
    %1867 = vmatpush1.msra.mxu0 0.0
    %1868 = vmatprep.subr.mxu0 0.0
    %1869 = vmatpush1.msra.mxu0 0.0
    %1870 = vmatprep.subr.mxu0 0.0
    %1871 = vmatpush1.msra.mxu0 0.0
    %1872 = vmatprep.subr.mxu0 0.0
    %1873 = vmatpush1.msra.mxu0 0.0
    %1874 = vmatprep.subr.mxu0 0.0
    %1875 = vmatpush1.msra.mxu0 0.0
    %1876 = vmatprep.subr.mxu0 0.0
    %1877 = vmatpush1.msra.mxu0 0.0
    %1878 = vmatprep.mubr.f32.mxu0 0.0
    %v1879 = vand.u32 %v1220, 4294901760
    %1880 = vmatmul.mubr.f32.gmra.mrb[0].mxu0 %v1879
    %v1881 = vpop.f32.mrb[0].mxu0
    %v1882 = vadd.f32 %v1795, %v1881
    %v1883 = vpop.f32.mrb[0].mxu0
    %1884 = vdwg.mxu0
    %1885 = vst [vmem:[#allocation10] sm:$0xff] %v1882
    // Predicated region
    $region46: #{qnet_forward_padded.1} parent=1 // pred_check
      _
    $region47: #{qnet_forward_padded.1} parent=1 // pred_check_branch
      %1887 = sbr.rel (0) target = $region49
    $region48: #{qnet_forward_padded.1} parent=1 // pred_region
      %s1889 = ssub.s32 128, 32
      %1890 = vsyncadd [#allocation4], %s1889
      %s1891 = sshll.u32 [#allocation10], 4
      %s1892 = int_to_ptr.vmem [resolvable:$true] %s1891
      %1897 = dma.vmem_to_hbm [thread:$0]  %s1892, 32, %s7, [#allocation4], 32, 32, 2
    $region49: #{qnet_forward_padded.1} parent=1 // pred_fallthru
      _
    // Predicated region
    $region50: #{qnet_forward_padded.1} parent=1 // pred_check
      _
    $region51: #{qnet_forward_padded.1} parent=1 // pred_check_branch
      %1899 = sbr.rel (0) target = $region53
    $region52: #{qnet_forward_padded.1} parent=1 // pred_region
      %1900 = dma.done [#allocation4], 128
    $region53: #{qnet_forward_padded.1} parent=1 // pred_fallthru
      _
    %1901 = vsyncpa [#allocation3], 1
    %1902 = vsyncpa [#allocation6], 1
    %1903 = vsyncpa [#allocation9], 1
    %1904 = vsyncpa [#allocation4], 1

</llo_original>
